<compile_context>
chip_gen: v7x
topology: tpu7x:2x2x1
jax: 0.10.0
libtpu: 0.0.40
codegen_flags: <defaults>
</compile_context>

<pallas_src>
import functools

import jax
import jax.numpy as jnp
from jax.experimental import pallas as pl
from jax.experimental.pallas import tpu as pltpu

IN_FEATS = 4
HIDDEN = 64
NUM_CLASSES = 3
OUT_PAD = 128          # lane-dense padded logits width (sliced to 3 in the wrapper)
DROP_P = 0.4


def ba3motif_kernel(num_unit,
                    x_ref, adj_ref, deg_ref, pool_ref, m1_ref, m2_ref,
                    wemb_ref, bemb_ref, wfused_ref, bfused_ref,
                    wl1_ref, bl1_ref, wl2_ref, bl2_ref,
                    out_ref):
    f32, bf16 = jnp.float32, jnp.bfloat16

    adj = adj_ref[0]                       # [nbn, nbn] bf16, block-diagonal slice
    deg = deg_ref[0]                       # [nbn, 1]  f32, precomputed weighted in-degree

    # node_emb: Linear(4, 64) + F.dropout(p=0.4) (mask prescaled by 1/(1-p)).
    # TODO(synk): torch RNG stream cannot be reproduced; mask drawn from JAX PRNG instead.
    h = jnp.dot(x_ref[0].astype(bf16), wemb_ref[...],
                preferred_element_type=f32) + bemb_ref[...]
    h = h * m1_ref[0]

    # num_unit x (LEConv + ReLU); one fused [H, 3H] matmul per unit (lin1|lin2|lin3).
    for u in range(num_unit):
        abc = jnp.dot(h.astype(bf16), wfused_ref[u],
                      preferred_element_type=f32) + bfused_ref[u]
        a = abc[:, :HIDDEN]                # lin1(x) (+ bias)
        b = abc[:, HIDDEN:2 * HIDDEN]      # lin2(x) (no bias; fused bias slot is 0)
        c = abc[:, 2 * HIDDEN:]            # lin3(x) (+ bias)
        # LEConv: out_i = sum_{j in N(i)} w_ji * (a_j - b_i) + c_i = A@a - deg*b + c
        h = jnp.dot(adj, a.astype(bf16), preferred_element_type=f32) - deg * b + c
        h = jnp.maximum(h, 0.0)            # ReLU

    # second F.dropout(p=0.4)
    h = h * m2_ref[0]

    # global_mean_pool -> [gpb, 64]; MLP head (Softmax defined but never applied in forward)
    g = jnp.dot(pool_ref[0], h.astype(bf16), preferred_element_type=f32)
    g = jnp.maximum(jnp.dot(g.astype(bf16), wl1_ref[...],
                            preferred_element_type=f32) + bl1_ref[...], 0.0)
    out_ref[0] = jnp.dot(g.astype(bf16), wl2_ref[...],
                         preferred_element_type=f32) + bl2_ref[...]


def ba3motif_forward(params, x, edge_index, edge_attr, batch, num_graphs, drop_masks,
                     nodes_per_graph, graphs_per_block=None):
    n, f_in = x.shape
    assert f_in == IN_FEATS
    assert n == num_graphs * nodes_per_graph, "expect contiguous, uniform-size graphs"
    # TODO(synk): variable-size graphs need a host-side packer keeping each graph inside
    # one node block; the uniform-size BA3Motif batching is handled here.
    if graphs_per_block is None:
        # Target ~256 nodes/block (MXU-width contraction on v6e/v7x; 2x128 pass on v5e).
        graphs_per_block = max(1, min(num_graphs, 256 // nodes_per_graph))
    gpb = graphs_per_block
    nbn = gpb * nodes_per_graph            # nodes per block
    nblk = -(-num_graphs // gpb)           # number of grid blocks
    g_pad = nblk * gpb                     # graphs incl. padding
    n_pad = nblk * nbn                     # nodes incl. padding

    f32, bf16 = jnp.float32, jnp.bfloat16
    ew = edge_attr.reshape(-1).astype(f32)
    src, dst = edge_index[0], edge_index[1]

    # Per-block dense adjacency (PyG flow source_to_target): adj[b, tgt, src] += w.
    blk_e = dst // nbn
    adj = jnp.zeros((nblk, nbn, nbn), f32).at[blk_e, dst % nbn, src % nbn].add(ew)
    # Weighted in-degree per target node, precomputed outside the kernel.
    deg = jnp.zeros((n_pad,), f32).at[dst].add(ew).reshape(nblk, nbn, 1)

    # Per-block mean-pool matrix [nblk, gpb, nbn].
    counts = jnp.maximum(jnp.zeros((g_pad,), f32).at[batch].add(1.0), 1.0)
    node = jnp.arange(n, dtype=jnp.int32)
    blk_n = batch // gpb
    pool = jnp.zeros((nblk, gpb, nbn), f32).at[
        blk_n, batch % gpb, node - blk_n * nbn].add(1.0 / counts[batch])

    def pad_nodes(a):
        return jnp.pad(a.astype(f32), ((0, n_pad - n), (0, 0)))

    m1, m2 = drop_masks
    x_blk = pad_nodes(x).reshape(nblk, nbn, IN_FEATS)
    m1_blk = pad_nodes(m1).reshape(nblk, nbn, HIDDEN)
    m2_blk = pad_nodes(m2).reshape(nblk, nbn, HIDDEN)

    # Fuse LEConv lin1/lin2/lin3 into one [U, H, 3H] weight (+ [U, 1, 3H] bias, 0 for lin2).
    num_unit = params["w1s"].shape[0]
    wfused = jnp.concatenate([params["w1s"], params["w2s"], params["w3s"]], axis=2)
    bfused = jnp.concatenate(
        [params["b1s"], jnp.zeros_like(params["b1s"]), params["b3s"]], axis=2)
    # Pad the 3-class head to a lane-dense 128-wide output (sliced back below).
    wl2p = jnp.pad(params["wl2"], ((0, 0), (0, OUT_PAD - NUM_CLASSES)))
    bl2p = jnp.pad(params["bl2"], ((0, 0), (0, OUT_PAD - NUM_CLASSES)))

    inputs = (
        x_blk, adj.astype(bf16), deg, pool.astype(bf16), m1_blk, m2_blk,
        params["wemb"].astype(bf16), params["bemb"].astype(f32),
        wfused.astype(bf16), bfused.astype(f32),
        params["wl1"].astype(bf16), params["bl1"].astype(f32),
        wl2p.astype(bf16), bl2p.astype(f32),
    )

    def blk3(shape):   # per-block tiled input
        return pl.BlockSpec((1,) + shape, lambda b: (b, 0, 0))

    def const2(shape):  # weights resident across all blocks
        return pl.BlockSpec(shape, lambda b: (0, 0))

    def const3(shape):
        return pl.BlockSpec(shape, lambda b: (0, 0, 0))

    out = pl.pallas_call(
        functools.partial(ba3motif_kernel, num_unit),
        out_shape=jax.ShapeDtypeStruct((nblk, gpb, OUT_PAD), f32),
        grid=(nblk,),
        in_specs=[
            blk3((nbn, IN_FEATS)),                    # x
            blk3((nbn, nbn)),                         # adj (bf16)
            blk3((nbn, 1)),                           # deg
            blk3((gpb, nbn)),                         # pool (bf16)
            blk3((nbn, HIDDEN)),                      # dropout mask 1
            blk3((nbn, HIDDEN)),                      # dropout mask 2
            const2((IN_FEATS, HIDDEN)),               # wemb
            const2((1, HIDDEN)),                      # bemb
            const3((num_unit, HIDDEN, 3 * HIDDEN)),   # fused LEConv weights
            const3((num_unit, 1, 3 * HIDDEN)),        # fused LEConv biases
            const2((HIDDEN, HIDDEN)),                 # head wl1
            const2((1, HIDDEN)),                      # head bl1
            const2((HIDDEN, OUT_PAD)),                # head wl2 (padded)
            const2((1, OUT_PAD)),                     # head bl2 (padded)
        ],
        out_specs=pl.BlockSpec((1, gpb, OUT_PAD), lambda b: (b, 0, 0)),
        compiler_params=pltpu.CompilerParams(
            dimension_semantics=("parallel",)),       # megacore split on v7x
    )(*inputs)

    return out.reshape(nblk * gpb, OUT_PAD)[:num_graphs, :NUM_CLASSES]


def _linear_init(key, fan_in, fan_out, bias=True):
    k1, k2 = jax.random.split(key)
    bound = 1.0 / jnp.sqrt(jnp.float32(fan_in))
    w = jax.random.uniform(k1, (fan_in, fan_out), jnp.float32, -bound, bound)
    b = (jax.random.uniform(k2, (1, fan_out), jnp.float32, -bound, bound)
         if bias else jnp.zeros((1, fan_out), jnp.float32))
    return w, b


def init_params(key, num_unit):
    keys = jax.random.split(key, 3 + num_unit)
    wemb, bemb = _linear_init(keys[0], IN_FEATS, HIDDEN)
    w1s, b1s, w2s, w3s, b3s = [], [], [], [], []
    for u in range(num_unit):
        ku = jax.random.split(keys[1 + u], 3)
        w1, b1 = _linear_init(ku[0], HIDDEN, HIDDEN, bias=True)    # LEConv.lin1
        w2, _ = _linear_init(ku[1], HIDDEN, HIDDEN, bias=False)    # LEConv.lin2 (no bias)
        w3, b3 = _linear_init(ku[2], HIDDEN, HIDDEN, bias=True)    # LEConv.lin3
        w1s.append(w1); b1s.append(b1); w2s.append(w2); w3s.append(w3); b3s.append(b3)
    wl1, bl1 = _linear_init(keys[1 + num_unit], HIDDEN, HIDDEN)
    wl2, bl2 = _linear_init(keys[2 + num_unit], HIDDEN, NUM_CLASSES)
    return dict(wemb=wemb, bemb=bemb,
                w1s=jnp.stack(w1s), b1s=jnp.stack(b1s),
                w2s=jnp.stack(w2s), w3s=jnp.stack(w3s), b3s=jnp.stack(b3s),
                wl1=wl1, bl1=bl1, wl2=wl2, bl2=bl2)


def reference_forward(params, x, edge_index, edge_attr, batch, num_graphs, drop_masks,
                      mm_dtype=jnp.float32):
    """Pure-JAX reference. mm_dtype=bf16 mirrors the kernel's MXU operand precision."""
    def mm(a, b):
        return jnp.dot(a.astype(mm_dtype), b.astype(mm_dtype),
                       preferred_element_type=jnp.float32)
    n = x.shape[0]
    adj = jnp.zeros((n, n), jnp.float32).at[edge_index[1], edge_index[0]].add(edge_attr)
    deg = adj.sum(1, keepdims=True)
    onehot = (batch[None, :] == jnp.arange(num_graphs)[:, None]).astype(jnp.float32)
    pool = onehot / jnp.maximum(onehot.sum(1, keepdims=True), 1.0)
    m1, m2 = drop_masks
    h = mm(x, params["wemb"]) + params["bemb"]
    h = h * m1
    for u in range(params["w1s"].shape[0]):
        a = mm(h, params["w1s"][u]) + params["b1s"][u]
        b = mm(h, params["w2s"][u])
        c = mm(h, params["w3s"][u]) + params["b3s"][u]
        h = jnp.maximum(mm(adj, a) - deg * b + c, 0.0)
    h = h * m2
    g = mm(pool, h)
    g = jnp.maximum(mm(g, params["wl1"]) + params["bl1"], 0.0)
    return mm(g, params["wl2"]) + params["bl2"]


if __name__ == "__main__":
    key = jax.random.PRNGKey(0)
    num_unit = 3
    num_graphs = 3
    nodes_per_graph = 16
    n = num_graphs * nodes_per_graph
    edges_per_graph = 48

    k_param, k_x, k_edge, k_attr, k_d1, k_d2 = jax.random.split(key, 6)
    params = init_params(k_param, num_unit)

    x = jax.random.normal(k_x, (n, IN_FEATS), jnp.float32)
    srcs, dsts = [], []
    for g in range(num_graphs):
        ks, kd = jax.random.split(jax.random.fold_in(k_edge, g))
        srcs.append(jax.random.randint(ks, (edges_per_graph,), 0, nodes_per_graph)
                    + g * nodes_per_graph)
        dsts.append(jax.random.randint(kd, (edges_per_graph,), 0, nodes_per_graph)
                    + g * nodes_per_graph)
    edge_index = jnp.stack([jnp.concatenate(srcs), jnp.concatenate(dsts)]).astype(jnp.int32)
    edge_attr = jax.random.uniform(k_attr, (num_graphs * edges_per_graph,), jnp.float32)
    batch = jnp.repeat(jnp.arange(num_graphs, dtype=jnp.int32), nodes_per_graph)

    # F.dropout(p=0.4) defaults to training=True in the reference module; masks drawn
    # deterministically from JAX PRNG and pre-scaled by 1/(1-p).
    keep = 1.0 - DROP_P
    m1 = (jax.random.uniform(k_d1, (n, HIDDEN)) >= DROP_P).astype(jnp.float32) / keep
    m2 = (jax.random.uniform(k_d2, (n, HIDDEN)) >= DROP_P).astype(jnp.float32) / keep
    drop_masks = (m1, m2)

    out = ba3motif_forward(params, x, edge_index, edge_attr, batch, num_graphs,
                           drop_masks, nodes_per_graph, graphs_per_block=2)
    out = jax.block_until_ready(out)
    assert out.shape == (num_graphs, NUM_CLASSES)

    # Tight check against a plain-JAX mirror of the kernel math (bf16 operands, f32 acc).
    ref_bf16 = reference_forward(params, x, edge_index, edge_attr, batch, num_graphs,
                                 drop_masks, mm_dtype=jnp.bfloat16)
    assert jnp.allclose(out, ref_bf16, rtol=1e-3, atol=1e-3), (out, ref_bf16)
    # Loose check against the full-f32 reference (difference = bf16 operand rounding only).
    ref_f32 = reference_forward(params, x, edge_index, edge_attr, batch, num_graphs,
                                drop_masks, mm_dtype=jnp.float32)
    assert jnp.allclose(out, ref_f32, rtol=1e-1, atol=1e-1), (out, ref_f32)
    print("KERNEL_OK")
</pallas_src>

<mosaic_0001>
module attributes {stable_mosaic.version = 11 : i64} {
  func.func @ba3motif_kernel(%arg0: i32, %arg1: memref<1x32x4xf32, #tpu.memory_space<vmem>>, %arg2: memref<1x32x32xbf16, #tpu.memory_space<vmem>>, %arg3: memref<1x32x1xf32, #tpu.memory_space<vmem>>, %arg4: memref<1x2x32xbf16, #tpu.memory_space<vmem>>, %arg5: memref<1x32x64xf32, #tpu.memory_space<vmem>>, %arg6: memref<1x32x64xf32, #tpu.memory_space<vmem>>, %arg7: memref<4x64xbf16, #tpu.memory_space<vmem>>, %arg8: memref<1x64xf32, #tpu.memory_space<vmem>>, %arg9: memref<3x64x192xbf16, #tpu.memory_space<vmem>>, %arg10: memref<3x1x192xf32, #tpu.memory_space<vmem>>, %arg11: memref<64x64xbf16, #tpu.memory_space<vmem>>, %arg12: memref<1x64xf32, #tpu.memory_space<vmem>>, %arg13: memref<64x128xbf16, #tpu.memory_space<vmem>>, %arg14: memref<1x128xf32, #tpu.memory_space<vmem>>, %arg15: memref<1x2x128xf32, #tpu.memory_space<vmem>>) attributes {dimension_semantics = [#tpu.dimension_semantics<parallel>], iteration_bounds = array<i64: 2>, scalar_prefetch = 0 : i64, scratch_operands = 0 : i64, tpu.core_type = #tpu.core_type<tc>, window_params = [{transform_indices = @transform_0, window_bounds = array<i64: 1, 32, 4>}, {transform_indices = @transform_1, window_bounds = array<i64: 1, 32, 32>}, {transform_indices = @transform_2, window_bounds = array<i64: 1, 32, 1>}, {transform_indices = @transform_3, window_bounds = array<i64: 1, 2, 32>}, {transform_indices = @transform_4, window_bounds = array<i64: 1, 32, 64>}, {transform_indices = @transform_5, window_bounds = array<i64: 1, 32, 64>}, {pipeline_mode = #tpu.pipeline_mode<synchronous>, transform_indices = @transform_6, window_bounds = array<i64: 4, 64>}, {pipeline_mode = #tpu.pipeline_mode<synchronous>, transform_indices = @transform_7, window_bounds = array<i64: 1, 64>}, {pipeline_mode = #tpu.pipeline_mode<synchronous>, transform_indices = @transform_8, window_bounds = array<i64: 3, 64, 192>}, {pipeline_mode = #tpu.pipeline_mode<synchronous>, transform_indices = @transform_9, window_bounds = array<i64: 3, 1, 192>}, {pipeline_mode = #tpu.pipeline_mode<synchronous>, transform_indices = @transform_10, window_bounds = array<i64: 64, 64>}, {pipeline_mode = #tpu.pipeline_mode<synchronous>, transform_indices = @transform_11, window_bounds = array<i64: 1, 64>}, {pipeline_mode = #tpu.pipeline_mode<synchronous>, transform_indices = @transform_12, window_bounds = array<i64: 64, 128>}, {pipeline_mode = #tpu.pipeline_mode<synchronous>, transform_indices = @transform_13, window_bounds = array<i64: 1, 128>}, {transform_indices = @transform_14, window_bounds = array<i64: 1, 2, 128>}]} {
    %c0 = arith.constant 0 : index
    %c0_0 = arith.constant 0 : index
    %c0_1 = arith.constant 0 : index
    %0 = vector.load %arg2[%c0, %c0_0, %c0_1] : memref<1x32x32xbf16, #tpu.memory_space<vmem>>, vector<1x32x32xbf16>
    %1 = vector.shape_cast %0 : vector<1x32x32xbf16> to vector<32x32xbf16>
    %c0_2 = arith.constant 0 : index
    %c0_3 = arith.constant 0 : index
    %c0_4 = arith.constant 0 : index
    %2 = vector.load %arg3[%c0_2, %c0_3, %c0_4] : memref<1x32x1xf32, #tpu.memory_space<vmem>>, vector<1x32x1xf32>
    %3 = vector.shape_cast %2 : vector<1x32x1xf32> to vector<32x1xf32>
    %c0_5 = arith.constant 0 : index
    %c0_6 = arith.constant 0 : index
    %c0_7 = arith.constant 0 : index
    %4 = vector.load %arg1[%c0_5, %c0_6, %c0_7] : memref<1x32x4xf32, #tpu.memory_space<vmem>>, vector<1x32x4xf32>
    %5 = vector.shape_cast %4 : vector<1x32x4xf32> to vector<32x4xf32>
    %6 = arith.truncf %5 : vector<32x4xf32> to vector<32x4xbf16>
    %c0_8 = arith.constant 0 : index
    %c0_9 = arith.constant 0 : index
    %7 = vector.load %arg7[%c0_8, %c0_9] : memref<4x64xbf16, #tpu.memory_space<vmem>>, vector<4x64xbf16>
    %cst = arith.constant dense<0.000000e+00> : vector<32x64xf32>
    %8 = tpu.matmul %6, %7, %cst {dimension_numbers = #tpu.dot_dimension_numbers<[1], [0], [0], [1], [0, 0, 1, 1], [], []>} : vector<32x4xbf16>, vector<4x64xbf16>, vector<32x64xf32> -> vector<32x64xf32>
    %c0_10 = arith.constant 0 : index
    %c0_11 = arith.constant 0 : index
    %9 = vector.load %arg8[%c0_10, %c0_11] : memref<1x64xf32, #tpu.memory_space<vmem>>, vector<1x64xf32>
    %10 = vector.broadcast %9 : vector<1x64xf32> to vector<32x64xf32>
    %11 = arith.addf %8, %10 : vector<32x64xf32>
    %c0_12 = arith.constant 0 : index
    %c0_13 = arith.constant 0 : index
    %c0_14 = arith.constant 0 : index
    %12 = vector.load %arg5[%c0_12, %c0_13, %c0_14] : memref<1x32x64xf32, #tpu.memory_space<vmem>>, vector<1x32x64xf32>
    %13 = vector.shape_cast %12 : vector<1x32x64xf32> to vector<32x64xf32>
    %14 = arith.mulf %11, %13 : vector<32x64xf32>
    %15 = arith.truncf %14 : vector<32x64xf32> to vector<32x64xbf16>
    %c0_15 = arith.constant 0 : index
    %c0_16 = arith.constant 0 : index
    %c0_17 = arith.constant 0 : index
    %16 = vector.load %arg9[%c0_15, %c0_16, %c0_17] : memref<3x64x192xbf16, #tpu.memory_space<vmem>>, vector<1x64x192xbf16>
    %17 = vector.shape_cast %16 : vector<1x64x192xbf16> to vector<64x192xbf16>
    %cst_18 = arith.constant dense<0.000000e+00> : vector<32x192xf32>
    %18 = tpu.matmul %15, %17, %cst_18 {dimension_numbers = #tpu.dot_dimension_numbers<[1], [0], [0], [1], [0, 0, 1, 1], [], []>} : vector<32x64xbf16>, vector<64x192xbf16>, vector<32x192xf32> -> vector<32x192xf32>
    %c0_19 = arith.constant 0 : index
    %c0_20 = arith.constant 0 : index
    %c0_21 = arith.constant 0 : index
    %19 = vector.load %arg10[%c0_19, %c0_20, %c0_21] : memref<3x1x192xf32, #tpu.memory_space<vmem>>, vector<1x1x192xf32>
    %20 = vector.shape_cast %19 : vector<1x1x192xf32> to vector<1x192xf32>
    %21 = vector.broadcast %20 : vector<1x192xf32> to vector<32x192xf32>
    %22 = arith.addf %18, %21 : vector<32x192xf32>
    %23 = vector.extract_strided_slice %22 {offsets = [0, 0], sizes = [32, 64], strides = [1, 1]} : vector<32x192xf32> to vector<32x64xf32>
    %24 = vector.extract_strided_slice %22 {offsets = [0, 64], sizes = [32, 64], strides = [1, 1]} : vector<32x192xf32> to vector<32x64xf32>
    %25 = vector.extract_strided_slice %22 {offsets = [0, 128], sizes = [32, 64], strides = [1, 1]} : vector<32x192xf32> to vector<32x64xf32>
    %26 = arith.truncf %23 : vector<32x64xf32> to vector<32x64xbf16>
    %cst_22 = arith.constant dense<0.000000e+00> : vector<32x64xf32>
    %27 = tpu.matmul %1, %26, %cst_22 {dimension_numbers = #tpu.dot_dimension_numbers<[1], [0], [0], [1], [0, 0, 1, 1], [], []>} : vector<32x32xbf16>, vector<32x64xbf16>, vector<32x64xf32> -> vector<32x64xf32>
    %28 = vector.broadcast %3 : vector<32x1xf32> to vector<32x64xf32>
    %29 = arith.mulf %28, %24 : vector<32x64xf32>
    %30 = arith.subf %27, %29 : vector<32x64xf32>
    %31 = arith.addf %30, %25 : vector<32x64xf32>
    %cst_23 = arith.constant 0.000000e+00 : f32
    %32 = vector.broadcast %cst_23 : f32 to vector<32x64xf32>
    %33 = arith.maximumf %31, %32 : vector<32x64xf32>
    %34 = arith.truncf %33 : vector<32x64xf32> to vector<32x64xbf16>
    %c1 = arith.constant 1 : index
    %c0_24 = arith.constant 0 : index
    %c0_25 = arith.constant 0 : index
    %35 = vector.load %arg9[%c1, %c0_24, %c0_25] : memref<3x64x192xbf16, #tpu.memory_space<vmem>>, vector<1x64x192xbf16>
    %36 = vector.shape_cast %35 : vector<1x64x192xbf16> to vector<64x192xbf16>
    %cst_26 = arith.constant dense<0.000000e+00> : vector<32x192xf32>
    %37 = tpu.matmul %34, %36, %cst_26 {dimension_numbers = #tpu.dot_dimension_numbers<[1], [0], [0], [1], [0, 0, 1, 1], [], []>} : vector<32x64xbf16>, vector<64x192xbf16>, vector<32x192xf32> -> vector<32x192xf32>
    %c1_27 = arith.constant 1 : index
    %c0_28 = arith.constant 0 : index
    %c0_29 = arith.constant 0 : index
    %38 = vector.load %arg10[%c1_27, %c0_28, %c0_29] : memref<3x1x192xf32, #tpu.memory_space<vmem>>, vector<1x1x192xf32>
    %39 = vector.shape_cast %38 : vector<1x1x192xf32> to vector<1x192xf32>
    %40 = vector.broadcast %39 : vector<1x192xf32> to vector<32x192xf32>
    %41 = arith.addf %37, %40 : vector<32x192xf32>
    %42 = vector.extract_strided_slice %41 {offsets = [0, 0], sizes = [32, 64], strides = [1, 1]} : vector<32x192xf32> to vector<32x64xf32>
    %43 = vector.extract_strided_slice %41 {offsets = [0, 64], sizes = [32, 64], strides = [1, 1]} : vector<32x192xf32> to vector<32x64xf32>
    %44 = vector.extract_strided_slice %41 {offsets = [0, 128], sizes = [32, 64], strides = [1, 1]} : vector<32x192xf32> to vector<32x64xf32>
    %45 = arith.truncf %42 : vector<32x64xf32> to vector<32x64xbf16>
    %cst_30 = arith.constant dense<0.000000e+00> : vector<32x64xf32>
    %46 = tpu.matmul %1, %45, %cst_30 {dimension_numbers = #tpu.dot_dimension_numbers<[1], [0], [0], [1], [0, 0, 1, 1], [], []>} : vector<32x32xbf16>, vector<32x64xbf16>, vector<32x64xf32> -> vector<32x64xf32>
    %47 = vector.broadcast %3 : vector<32x1xf32> to vector<32x64xf32>
    %48 = arith.mulf %47, %43 : vector<32x64xf32>
    %49 = arith.subf %46, %48 : vector<32x64xf32>
    %50 = arith.addf %49, %44 : vector<32x64xf32>
    %cst_31 = arith.constant 0.000000e+00 : f32
    %51 = vector.broadcast %cst_31 : f32 to vector<32x64xf32>
    %52 = arith.maximumf %50, %51 : vector<32x64xf32>
    %53 = arith.truncf %52 : vector<32x64xf32> to vector<32x64xbf16>
    %c2 = arith.constant 2 : index
    %c0_32 = arith.constant 0 : index
    %c0_33 = arith.constant 0 : index
    %54 = vector.load %arg9[%c2, %c0_32, %c0_33] : memref<3x64x192xbf16, #tpu.memory_space<vmem>>, vector<1x64x192xbf16>
    %55 = vector.shape_cast %54 : vector<1x64x192xbf16> to vector<64x192xbf16>
    %cst_34 = arith.constant dense<0.000000e+00> : vector<32x192xf32>
    %56 = tpu.matmul %53, %55, %cst_34 {dimension_numbers = #tpu.dot_dimension_numbers<[1], [0], [0], [1], [0, 0, 1, 1], [], []>} : vector<32x64xbf16>, vector<64x192xbf16>, vector<32x192xf32> -> vector<32x192xf32>
    %c2_35 = arith.constant 2 : index
    %c0_36 = arith.constant 0 : index
    %c0_37 = arith.constant 0 : index
    %57 = vector.load %arg10[%c2_35, %c0_36, %c0_37] : memref<3x1x192xf32, #tpu.memory_space<vmem>>, vector<1x1x192xf32>
    %58 = vector.shape_cast %57 : vector<1x1x192xf32> to vector<1x192xf32>
    %59 = vector.broadcast %58 : vector<1x192xf32> to vector<32x192xf32>
    %60 = arith.addf %56, %59 : vector<32x192xf32>
    %61 = vector.extract_strided_slice %60 {offsets = [0, 0], sizes = [32, 64], strides = [1, 1]} : vector<32x192xf32> to vector<32x64xf32>
    %62 = vector.extract_strided_slice %60 {offsets = [0, 64], sizes = [32, 64], strides = [1, 1]} : vector<32x192xf32> to vector<32x64xf32>
    %63 = vector.extract_strided_slice %60 {offsets = [0, 128], sizes = [32, 64], strides = [1, 1]} : vector<32x192xf32> to vector<32x64xf32>
    %64 = arith.truncf %61 : vector<32x64xf32> to vector<32x64xbf16>
    %cst_38 = arith.constant dense<0.000000e+00> : vector<32x64xf32>
    %65 = tpu.matmul %1, %64, %cst_38 {dimension_numbers = #tpu.dot_dimension_numbers<[1], [0], [0], [1], [0, 0, 1, 1], [], []>} : vector<32x32xbf16>, vector<32x64xbf16>, vector<32x64xf32> -> vector<32x64xf32>
    %66 = vector.broadcast %3 : vector<32x1xf32> to vector<32x64xf32>
    %67 = arith.mulf %66, %62 : vector<32x64xf32>
    %68 = arith.subf %65, %67 : vector<32x64xf32>
    %69 = arith.addf %68, %63 : vector<32x64xf32>
    %cst_39 = arith.constant 0.000000e+00 : f32
    %70 = vector.broadcast %cst_39 : f32 to vector<32x64xf32>
    %71 = arith.maximumf %69, %70 : vector<32x64xf32>
    %c0_40 = arith.constant 0 : index
    %c0_41 = arith.constant 0 : index
    %c0_42 = arith.constant 0 : index
    %72 = vector.load %arg6[%c0_40, %c0_41, %c0_42] : memref<1x32x64xf32, #tpu.memory_space<vmem>>, vector<1x32x64xf32>
    %73 = vector.shape_cast %72 : vector<1x32x64xf32> to vector<32x64xf32>
    %74 = arith.mulf %71, %73 : vector<32x64xf32>
    %c0_43 = arith.constant 0 : index
    %c0_44 = arith.constant 0 : index
    %c0_45 = arith.constant 0 : index
    %75 = vector.load %arg4[%c0_43, %c0_44, %c0_45] : memref<1x2x32xbf16, #tpu.memory_space<vmem>>, vector<1x2x32xbf16>
    %76 = vector.shape_cast %75 : vector<1x2x32xbf16> to vector<2x32xbf16>
    %77 = arith.truncf %74 : vector<32x64xf32> to vector<32x64xbf16>
    %cst_46 = arith.constant dense<0.000000e+00> : vector<2x64xf32>
    %78 = tpu.matmul %76, %77, %cst_46 {dimension_numbers = #tpu.dot_dimension_numbers<[1], [0], [0], [1], [0, 0, 1, 1], [], []>} : vector<2x32xbf16>, vector<32x64xbf16>, vector<2x64xf32> -> vector<2x64xf32>
    %79 = arith.truncf %78 : vector<2x64xf32> to vector<2x64xbf16>
    %c0_47 = arith.constant 0 : index
    %c0_48 = arith.constant 0 : index
    %80 = vector.load %arg11[%c0_47, %c0_48] : memref<64x64xbf16, #tpu.memory_space<vmem>>, vector<64x64xbf16>
    %cst_49 = arith.constant dense<0.000000e+00> : vector<2x64xf32>
    %81 = tpu.matmul %79, %80, %cst_49 {dimension_numbers = #tpu.dot_dimension_numbers<[1], [0], [0], [1], [0, 0, 1, 1], [], []>} : vector<2x64xbf16>, vector<64x64xbf16>, vector<2x64xf32> -> vector<2x64xf32>
    %c0_50 = arith.constant 0 : index
    %c0_51 = arith.constant 0 : index
    %82 = vector.load %arg12[%c0_50, %c0_51] : memref<1x64xf32, #tpu.memory_space<vmem>>, vector<1x64xf32>
    %83 = vector.broadcast %82 : vector<1x64xf32> to vector<2x64xf32>
    %84 = arith.addf %81, %83 : vector<2x64xf32>
    %cst_52 = arith.constant 0.000000e+00 : f32
    %85 = vector.broadcast %cst_52 : f32 to vector<2x64xf32>
    %86 = arith.maximumf %84, %85 : vector<2x64xf32>
    %87 = arith.truncf %86 : vector<2x64xf32> to vector<2x64xbf16>
    %c0_53 = arith.constant 0 : index
    %c0_54 = arith.constant 0 : index
    %88 = vector.load %arg13[%c0_53, %c0_54] : memref<64x128xbf16, #tpu.memory_space<vmem>>, vector<64x128xbf16>
    %cst_55 = arith.constant dense<0.000000e+00> : vector<2x128xf32>
    %89 = tpu.matmul %87, %88, %cst_55 {dimension_numbers = #tpu.dot_dimension_numbers<[1], [0], [0], [1], [0, 0, 1, 1], [], []>} : vector<2x64xbf16>, vector<64x128xbf16>, vector<2x128xf32> -> vector<2x128xf32>
    %c0_56 = arith.constant 0 : index
    %c0_57 = arith.constant 0 : index
    %90 = vector.load %arg14[%c0_56, %c0_57] : memref<1x128xf32, #tpu.memory_space<vmem>>, vector<1x128xf32>
    %91 = vector.broadcast %90 : vector<1x128xf32> to vector<2x128xf32>
    %92 = arith.addf %89, %91 : vector<2x128xf32>
    %c0_58 = arith.constant 0 : index
    %c0_59 = arith.constant 0 : index
    %c0_60 = arith.constant 0 : index
    %93 = vector.load %arg15[%c0_58, %c0_59, %c0_60] : memref<1x2x128xf32, #tpu.memory_space<vmem>>, vector<1x2x128xf32>
    %94 = vector.shape_cast %93 : vector<1x2x128xf32> to vector<2x128xf32>
    %95 = vector.shape_cast %92 : vector<2x128xf32> to vector<1x2x128xf32>
    tpu.vector_store %arg15[%c0_58, %c0_59, %c0_60], %95 {strides = array<i32>} : memref<1x2x128xf32, #tpu.memory_space<vmem>>, vector<1x2x128xf32>,
    return
  }
  func.func @transform_0(%arg0: i32) -> (i32, i32, i32) {
    %c0_i32 = arith.constant 0 : i32
    %c0_i32_0 = arith.constant 0 : i32
    %c0_i32_1 = arith.constant 0 : i32
    return %arg0, %c0_i32, %c0_i32_0 : i32, i32, i32
  }
  func.func @transform_1(%arg0: i32) -> (i32, i32, i32) {
    %c0_i32 = arith.constant 0 : i32
    %c0_i32_0 = arith.constant 0 : i32
    %c0_i32_1 = arith.constant 0 : i32
    return %arg0, %c0_i32, %c0_i32_0 : i32, i32, i32
  }
  func.func @transform_2(%arg0: i32) -> (i32, i32, i32) {
    %c0_i32 = arith.constant 0 : i32
    %c0_i32_0 = arith.constant 0 : i32
    %c0_i32_1 = arith.constant 0 : i32
    return %arg0, %c0_i32, %c0_i32_0 : i32, i32, i32
  }
  func.func @transform_3(%arg0: i32) -> (i32, i32, i32) {
    %c0_i32 = arith.constant 0 : i32
    %c0_i32_0 = arith.constant 0 : i32
    %c0_i32_1 = arith.constant 0 : i32
    return %arg0, %c0_i32, %c0_i32_0 : i32, i32, i32
  }
  func.func @transform_4(%arg0: i32) -> (i32, i32, i32) {
    %c0_i32 = arith.constant 0 : i32
    %c0_i32_0 = arith.constant 0 : i32
    %c0_i32_1 = arith.constant 0 : i32
    return %arg0, %c0_i32, %c0_i32_0 : i32, i32, i32
  }
  func.func @transform_5(%arg0: i32) -> (i32, i32, i32) {
    %c0_i32 = arith.constant 0 : i32
    %c0_i32_0 = arith.constant 0 : i32
    %c0_i32_1 = arith.constant 0 : i32
    return %arg0, %c0_i32, %c0_i32_0 : i32, i32, i32
  }
  func.func @transform_6(%arg0: i32) -> (i32, i32) {
    %c0_i32 = arith.constant 0 : i32
    %c0_i32_0 = arith.constant 0 : i32
    %c0_i32_1 = arith.constant 0 : i32
    return %c0_i32, %c0_i32_0 : i32, i32
  }
  func.func @transform_7(%arg0: i32) -> (i32, i32) {
    %c0_i32 = arith.constant 0 : i32
    %c0_i32_0 = arith.constant 0 : i32
    %c0_i32_1 = arith.constant 0 : i32
    return %c0_i32, %c0_i32_0 : i32, i32
  }
  func.func @transform_8(%arg0: i32) -> (i32, i32, i32) {
    %c0_i32 = arith.constant 0 : i32
    %c0_i32_0 = arith.constant 0 : i32
    %c0_i32_1 = arith.constant 0 : i32
    %c0_i32_2 = arith.constant 0 : i32
    return %c0_i32, %c0_i32_0, %c0_i32_1 : i32, i32, i32
  }
  func.func @transform_9(%arg0: i32) -> (i32, i32, i32) {
    %c0_i32 = arith.constant 0 : i32
    %c0_i32_0 = arith.constant 0 : i32
    %c0_i32_1 = arith.constant 0 : i32
    %c0_i32_2 = arith.constant 0 : i32
    return %c0_i32, %c0_i32_0, %c0_i32_1 : i32, i32, i32
  }
  func.func @transform_10(%arg0: i32) -> (i32, i32) {
    %c0_i32 = arith.constant 0 : i32
    %c0_i32_0 = arith.constant 0 : i32
    %c0_i32_1 = arith.constant 0 : i32
    return %c0_i32, %c0_i32_0 : i32, i32
  }
  func.func @transform_11(%arg0: i32) -> (i32, i32) {
    %c0_i32 = arith.constant 0 : i32
    %c0_i32_0 = arith.constant 0 : i32
    %c0_i32_1 = arith.constant 0 : i32
    return %c0_i32, %c0_i32_0 : i32, i32
  }
  func.func @transform_12(%arg0: i32) -> (i32, i32) {
    %c0_i32 = arith.constant 0 : i32
    %c0_i32_0 = arith.constant 0 : i32
    %c0_i32_1 = arith.constant 0 : i32
    return %c0_i32, %c0_i32_0 : i32, i32
  }
  func.func @transform_13(%arg0: i32) -> (i32, i32) {
    %c0_i32 = arith.constant 0 : i32
    %c0_i32_0 = arith.constant 0 : i32
    %c0_i32_1 = arith.constant 0 : i32
    return %c0_i32, %c0_i32_0 : i32, i32
  }
  func.func @transform_14(%arg0: i32) -> (i32, i32, i32) {
    %c0_i32 = arith.constant 0 : i32
    %c0_i32_0 = arith.constant 0 : i32
    %c0_i32_1 = arith.constant 0 : i32
    return %arg0, %c0_i32, %c0_i32_0 : i32, i32, i32
  }
}

</mosaic_0001>

<llo_original>
// kernel: tpu_custom_call.1
$region0: #{tpu_custom_call.1}
  #allocation0 [shape = 'u32[]', space=smem, size = 0x4, offset = 0x4, fixed_abs, tag = 'smem constant byte address 0x4 - core index']
  #allocation1 [shape = 'u32[144,128]{1,0:T(1,128)}', space=vmem, size = 0x12000, scoped, tag = 'internal scratch']
  %s0 = inlined_call_operand.vmem [shape: f32[2,32,4], index: 0, kind: input, shape index: {}]
  %s1 = inlined_call_operand.hbm [shape: bf16[2,32,32], index: 1, kind: input, shape index: {}]
  %s2 = inlined_call_operand.vmem [shape: f32[2,32,1], index: 2, kind: input, shape index: {}]
  %s3 = inlined_call_operand.hbm [shape: bf16[2,2,32], index: 3, kind: input, shape index: {}]
  %s4 = inlined_call_operand.vmem [shape: f32[2,32,64], index: 4, kind: input, shape index: {}]
  %s5 = inlined_call_operand.vmem [shape: f32[2,32,64], index: 5, kind: input, shape index: {}]
  %s6 = inlined_call_operand.hbm [shape: bf16[4,64], index: 6, kind: input, shape index: {}]
  %s7 = inlined_call_operand.vmem [shape: f32[1,64], index: 7, kind: input, shape index: {}]
  %s8 = inlined_call_operand.hbm [shape: bf16[3,64,192], index: 8, kind: input, shape index: {}]
  %s9 = inlined_call_operand.vmem [shape: f32[3,1,192], index: 9, kind: input, shape index: {}]
  %s10 = inlined_call_operand.vmem [shape: bf16[64,64], index: 10, kind: input, shape index: {}]
  %s11 = inlined_call_operand.vmem [shape: f32[1,64], index: 11, kind: input, shape index: {}]
  %s12 = inlined_call_operand.hbm [shape: bf16[64,128], index: 12, kind: input, shape index: {}]
  %s13 = inlined_call_operand.vmem [shape: f32[1,128], index: 13, kind: input, shape index: {}]
  %s14 = inlined_call_operand.hbm [shape: f32[2,2,128], index: 14, kind: output, shape index: {}]
  %s15 = sld [smem:[#allocation0]]
  $region109: #{tpu_custom_call.1} parent=0
    _
  %s17 = ssub.s32 1, %s15
  %s18 = scalar_select 0, %s17, %s15
  $region1: #{tpu_custom_call.1} parent=0
    #allocation2 [shape = 'u8[16384]{0}', space=vmem, size = 0x4000, scoped, tag = 'input window, operand 1']
    #allocation3 [shape = 's32[2]{0}', space=sflag, size = 0x8, scoped, tag = 'scoped memory for tpu_custom_call.1']
    #allocation4 [shape = 's32[2]{0}', space=sflag, size = 0x8, scoped, tag = 'scoped memory for tpu_custom_call.1']
    #allocation5 [shape = 'u8[1024]{0}', space=vmem, size = 0x400, scoped, tag = 'input window, operand 3']
    #allocation6 [shape = 's32[2]{0}', space=sflag, size = 0x8, scoped, tag = 'scoped memory for tpu_custom_call.1']
    #allocation7 [shape = 'u8[1024]{0}', space=vmem, size = 0x400, scoped, tag = 'input window, operand 6, single buffered']
    #allocation8 [shape = 'u8[98304]{0}', space=vmem, size = 0x18000, scoped, tag = 'input window, operand 8, single buffered']
    #allocation9 [shape = 's32[1]{0}', space=sflag, size = 0x4, scoped, tag = 'scoped memory for tpu_custom_call.1']
    #allocation10 [shape = 'u8[16384]{0}', space=vmem, size = 0x4000, scoped, tag = 'input window, operand 12, single buffered']
    #allocation11 [shape = 'u8[2048]{0}', space=vmem, size = 0x800, scoped, tag = 'output window, operand 0']
    %19 = vsyncpa [#allocation3], 0
    %s20 = scalar_lea.sflag [#allocation3], 1
    %21 = vsyncpa %s20, 0
    %22 = vsyncpa [#allocation6], 0
    %s23 = scalar_lea.sflag [#allocation6], 1
    %24 = vsyncpa %s23, 0
    %25 = vsyncpa [#allocation9], 0
    %26 = vsyncpa [#allocation4], 0
    %s27 = scalar_lea.sflag [#allocation4], 1
    %28 = vsyncpa %s27, 0
    loop: start=0, step=1, limit=4
    $region2: #{tpu_custom_call.1} parent=1 // loop_pre_header
      _
    $region3: #{tpu_custom_call.1} parent=1 // loop_header
      %s30 = sphi 0, %s34
      %p31 = scmp.ge.s32.totalorder %s30, 4
      %s40 = sphi 0, %s42
      %s43 = sphi 0, %s40
      %s44 = sphi 0, %s43
      %s60 = sphi 0, %s44
      %s66 = sphi 0, %s68
      %s69 = sphi 0, %s66
      %s70 = sphi 0, %s69
      %s86 = sphi 0, %s70
      %s92 = sphi 0, %s94
      %s95 = sphi 0, %s92
      %s96 = sphi 0, %s95
      %s112 = sphi 0, %s96
      %s118 = sphi 0, %s120
      %s121 = sphi 0, %s118
      %s122 = sphi 0, %s121
      %s138 = sphi 0, %s122
      %s144 = sphi 0, %s146
      %s147 = sphi 0, %s144
      %s148 = sphi 0, %s147
      %s164 = sphi 0, %s148
      %s170 = sphi 0, %s172
      %s173 = sphi 0, %s170
      %s174 = sphi 0, %s173
      %s190 = sphi 0, %s174
      %s194 = sphi 0, %s194
      %s196 = sphi 0, %s194
      %s197 = sphi 0, %s196
      %s211 = sphi 0, %s197
      %s215 = sphi 0, %s215
      %s217 = sphi 0, %s215
      %s218 = sphi 0, %s217
      %s232 = sphi 0, %s218
      %s236 = sphi 0, %s236
      %s238 = sphi 0, %s236
      %s239 = sphi 0, %s238
      %s253 = sphi 0, %s239
      %s257 = sphi 0, %s257
      %s259 = sphi 0, %s257
      %s260 = sphi 0, %s259
      %s274 = sphi 0, %s260
      %s278 = sphi 0, %s278
      %s280 = sphi 0, %s278
      %s281 = sphi 0, %s280
      %s295 = sphi 0, %s281
      %s299 = sphi 0, %s299
      %s301 = sphi 0, %s299
      %s302 = sphi 0, %s301
      %s316 = sphi 0, %s302
      %s320 = sphi 0, %s320
      %s322 = sphi 0, %s320
      %s323 = sphi 0, %s322
      %s337 = sphi 0, %s323
      %s341 = sphi 0, %s341
      %s343 = sphi 0, %s341
      %s344 = sphi 0, %s343
      %s358 = sphi 0, %s344
      %s364 = sphi 0, %s366
      %s367 = sphi 0, %s364
      %s368 = sphi 0, %s367
      %s384 = sphi 0, %s368
    $region4: #{tpu_custom_call.1} parent=1 // loop_header_branch
      %33 = sbr.rel (%p31) target = $region8
    $region5: #{tpu_custom_call.1} parent=1 // loop_body
      %s35 = ssub.s32 %s30, 1
      %s36 = ssub.s32 %s30, 2
      %s37 = sadd.s32 %s30, 1
      %s38 = ssub.s32 %s30, %s37
      %p39 = scmp.eq.s32.totalorder %s38, 0
      %s41 = sadd.s32 %s40, 1
      %s42 = scalar_select %p39, %s40, %s41
      %p45 = pneg %p39
      %p46 = scmp.eq.s32.totalorder %s30, 1
      %p47 = por %p45, %p46
      %p48 = scmp.ne.s32.totalorder %s40, %s43
      %p49 = scmp.eq.s32.totalorder %s30, 0
      %p50 = por %p48, %p49
      %p51 = scmp.ne.s32.totalorder %s40, %s43
      %p52 = scmp.eq.s32.totalorder %s35, 1
      %p53 = por %p51, %p52
      %p54 = scmp.ne.s32.totalorder %s43, %s44
      %p55 = scmp.eq.s32.totalorder %s35, 0
      %p56 = por %p54, %p55
      %p57 = scmp.ne.s32.totalorder %s43, %s44
      %p58 = scmp.eq.s32.totalorder %s36, 1
      %p59 = por %p57, %p58
      %p61 = scmp.ne.s32.totalorder %s44, %s60
      %p62 = scmp.eq.s32.totalorder %s36, 0
      %p63 = por %p61, %p62
      %s64 = ssub.s32 %s30, %s37
      %p65 = scmp.eq.s32.totalorder %s64, 0
      %s67 = sadd.s32 %s66, 1
      %s68 = scalar_select %p65, %s66, %s67
      %p71 = pneg %p65
      %p72 = scmp.eq.s32.totalorder %s30, 1
      %p73 = por %p71, %p72
      %p74 = scmp.ne.s32.totalorder %s66, %s69
      %p75 = scmp.eq.s32.totalorder %s30, 0
      %p76 = por %p74, %p75
      %p77 = scmp.ne.s32.totalorder %s66, %s69
      %p78 = scmp.eq.s32.totalorder %s35, 1
      %p79 = por %p77, %p78
      %p80 = scmp.ne.s32.totalorder %s69, %s70
      %p81 = scmp.eq.s32.totalorder %s35, 0
      %p82 = por %p80, %p81
      %p83 = scmp.ne.s32.totalorder %s69, %s70
      %p84 = scmp.eq.s32.totalorder %s36, 1
      %p85 = por %p83, %p84
      %p87 = scmp.ne.s32.totalorder %s70, %s86
      %p88 = scmp.eq.s32.totalorder %s36, 0
      %p89 = por %p87, %p88
      %s90 = ssub.s32 %s30, %s37
      %p91 = scmp.eq.s32.totalorder %s90, 0
      %s93 = sadd.s32 %s92, 1
      %s94 = scalar_select %p91, %s92, %s93
      %p97 = pneg %p91
      %p98 = scmp.eq.s32.totalorder %s30, 1
      %p99 = por %p97, %p98
      %p100 = scmp.ne.s32.totalorder %s92, %s95
      %p101 = scmp.eq.s32.totalorder %s30, 0
      %p102 = por %p100, %p101
      %p103 = scmp.ne.s32.totalorder %s92, %s95
      %p104 = scmp.eq.s32.totalorder %s35, 1
      %p105 = por %p103, %p104
      %p106 = scmp.ne.s32.totalorder %s95, %s96
      %p107 = scmp.eq.s32.totalorder %s35, 0
      %p108 = por %p106, %p107
      %p109 = scmp.ne.s32.totalorder %s95, %s96
      %p110 = scmp.eq.s32.totalorder %s36, 1
      %p111 = por %p109, %p110
      %p113 = scmp.ne.s32.totalorder %s96, %s112
      %p114 = scmp.eq.s32.totalorder %s36, 0
      %p115 = por %p113, %p114
      %s116 = ssub.s32 %s30, %s37
      %p117 = scmp.eq.s32.totalorder %s116, 0
      %s119 = sadd.s32 %s118, 1
      %s120 = scalar_select %p117, %s118, %s119
      %p123 = pneg %p117
      %p124 = scmp.eq.s32.totalorder %s30, 1
      %p125 = por %p123, %p124
      %p126 = scmp.ne.s32.totalorder %s118, %s121
      %p127 = scmp.eq.s32.totalorder %s30, 0
      %p128 = por %p126, %p127
      %p129 = scmp.ne.s32.totalorder %s118, %s121
      %p130 = scmp.eq.s32.totalorder %s35, 1
      %p131 = por %p129, %p130
      %p132 = scmp.ne.s32.totalorder %s121, %s122
      %p133 = scmp.eq.s32.totalorder %s35, 0
      %p134 = por %p132, %p133
      %p135 = scmp.ne.s32.totalorder %s121, %s122
      %p136 = scmp.eq.s32.totalorder %s36, 1
      %p137 = por %p135, %p136
      %p139 = scmp.ne.s32.totalorder %s122, %s138
      %p140 = scmp.eq.s32.totalorder %s36, 0
      %p141 = por %p139, %p140
      %s142 = ssub.s32 %s30, %s37
      %p143 = scmp.eq.s32.totalorder %s142, 0
      %s145 = sadd.s32 %s144, 1
      %s146 = scalar_select %p143, %s144, %s145
      %p149 = pneg %p143
      %p150 = scmp.eq.s32.totalorder %s30, 1
      %p151 = por %p149, %p150
      %p152 = scmp.ne.s32.totalorder %s144, %s147
      %p153 = scmp.eq.s32.totalorder %s30, 0
      %p154 = por %p152, %p153
      %p155 = scmp.ne.s32.totalorder %s144, %s147
      %p156 = scmp.eq.s32.totalorder %s35, 1
      %p157 = por %p155, %p156
      %p158 = scmp.ne.s32.totalorder %s147, %s148
      %p159 = scmp.eq.s32.totalorder %s35, 0
      %p160 = por %p158, %p159
      %p161 = scmp.ne.s32.totalorder %s147, %s148
      %p162 = scmp.eq.s32.totalorder %s36, 1
      %p163 = por %p161, %p162
      %p165 = scmp.ne.s32.totalorder %s148, %s164
      %p166 = scmp.eq.s32.totalorder %s36, 0
      %p167 = por %p165, %p166
      %s168 = ssub.s32 %s30, %s37
      %p169 = scmp.eq.s32.totalorder %s168, 0
      %s171 = sadd.s32 %s170, 1
      %s172 = scalar_select %p169, %s170, %s171
      %p175 = pneg %p169
      %p176 = scmp.eq.s32.totalorder %s30, 1
      %p177 = por %p175, %p176
      %p178 = scmp.ne.s32.totalorder %s170, %s173
      %p179 = scmp.eq.s32.totalorder %s30, 0
      %p180 = por %p178, %p179
      %p181 = scmp.ne.s32.totalorder %s170, %s173
      %p182 = scmp.eq.s32.totalorder %s35, 1
      %p183 = por %p181, %p182
      %p184 = scmp.ne.s32.totalorder %s173, %s174
      %p185 = scmp.eq.s32.totalorder %s35, 0
      %p186 = por %p184, %p185
      %p187 = scmp.ne.s32.totalorder %s173, %s174
      %p188 = scmp.eq.s32.totalorder %s36, 1
      %p189 = por %p187, %p188
      %p191 = scmp.ne.s32.totalorder %s174, %s190
      %p192 = scmp.eq.s32.totalorder %s36, 0
      %p193 = por %p191, %p192
      %s195 = sadd.s32 %s194, 1
      %p198 = scmp.eq.s32.totalorder %s30, 1
      %p199 = scmp.ne.s32.totalorder %s194, %s196
      %p200 = scmp.eq.s32.totalorder %s30, 0
      %p201 = por %p199, %p200
      %p202 = scmp.ne.s32.totalorder %s194, %s196
      %p203 = scmp.eq.s32.totalorder %s35, 1
      %p204 = por %p202, %p203
      %p205 = scmp.ne.s32.totalorder %s196, %s197
      %p206 = scmp.eq.s32.totalorder %s35, 0
      %p207 = por %p205, %p206
      %p208 = scmp.ne.s32.totalorder %s196, %s197
      %p209 = scmp.eq.s32.totalorder %s36, 1
      %p210 = por %p208, %p209
      %p212 = scmp.ne.s32.totalorder %s197, %s211
      %p213 = scmp.eq.s32.totalorder %s36, 0
      %p214 = por %p212, %p213
      %s216 = sadd.s32 %s215, 1
      %p219 = scmp.eq.s32.totalorder %s30, 1
      %p220 = scmp.ne.s32.totalorder %s215, %s217
      %p221 = scmp.eq.s32.totalorder %s30, 0
      %p222 = por %p220, %p221
      %p223 = scmp.ne.s32.totalorder %s215, %s217
      %p224 = scmp.eq.s32.totalorder %s35, 1
      %p225 = por %p223, %p224
      %p226 = scmp.ne.s32.totalorder %s217, %s218
      %p227 = scmp.eq.s32.totalorder %s35, 0
      %p228 = por %p226, %p227
      %p229 = scmp.ne.s32.totalorder %s217, %s218
      %p230 = scmp.eq.s32.totalorder %s36, 1
      %p231 = por %p229, %p230
      %p233 = scmp.ne.s32.totalorder %s218, %s232
      %p234 = scmp.eq.s32.totalorder %s36, 0
      %p235 = por %p233, %p234
      %s237 = sadd.s32 %s236, 1
      %p240 = scmp.eq.s32.totalorder %s30, 1
      %p241 = scmp.ne.s32.totalorder %s236, %s238
      %p242 = scmp.eq.s32.totalorder %s30, 0
      %p243 = por %p241, %p242
      %p244 = scmp.ne.s32.totalorder %s236, %s238
      %p245 = scmp.eq.s32.totalorder %s35, 1
      %p246 = por %p244, %p245
      %p247 = scmp.ne.s32.totalorder %s238, %s239
      %p248 = scmp.eq.s32.totalorder %s35, 0
      %p249 = por %p247, %p248
      %p250 = scmp.ne.s32.totalorder %s238, %s239
      %p251 = scmp.eq.s32.totalorder %s36, 1
      %p252 = por %p250, %p251
      %p254 = scmp.ne.s32.totalorder %s239, %s253
      %p255 = scmp.eq.s32.totalorder %s36, 0
      %p256 = por %p254, %p255
      %s258 = sadd.s32 %s257, 1
      %p261 = scmp.eq.s32.totalorder %s30, 1
      %p262 = scmp.ne.s32.totalorder %s257, %s259
      %p263 = scmp.eq.s32.totalorder %s30, 0
      %p264 = por %p262, %p263
      %p265 = scmp.ne.s32.totalorder %s257, %s259
      %p266 = scmp.eq.s32.totalorder %s35, 1
      %p267 = por %p265, %p266
      %p268 = scmp.ne.s32.totalorder %s259, %s260
      %p269 = scmp.eq.s32.totalorder %s35, 0
      %p270 = por %p268, %p269
      %p271 = scmp.ne.s32.totalorder %s259, %s260
      %p272 = scmp.eq.s32.totalorder %s36, 1
      %p273 = por %p271, %p272
      %p275 = scmp.ne.s32.totalorder %s260, %s274
      %p276 = scmp.eq.s32.totalorder %s36, 0
      %p277 = por %p275, %p276
      %s279 = sadd.s32 %s278, 1
      %p282 = scmp.eq.s32.totalorder %s30, 1
      %p283 = scmp.ne.s32.totalorder %s278, %s280
      %p284 = scmp.eq.s32.totalorder %s30, 0
      %p285 = por %p283, %p284
      %p286 = scmp.ne.s32.totalorder %s278, %s280
      %p287 = scmp.eq.s32.totalorder %s35, 1
      %p288 = por %p286, %p287
      %p289 = scmp.ne.s32.totalorder %s280, %s281
      %p290 = scmp.eq.s32.totalorder %s35, 0
      %p291 = por %p289, %p290
      %p292 = scmp.ne.s32.totalorder %s280, %s281
      %p293 = scmp.eq.s32.totalorder %s36, 1
      %p294 = por %p292, %p293
      %p296 = scmp.ne.s32.totalorder %s281, %s295
      %p297 = scmp.eq.s32.totalorder %s36, 0
      %p298 = por %p296, %p297
      %s300 = sadd.s32 %s299, 1
      %p303 = scmp.eq.s32.totalorder %s30, 1
      %p304 = scmp.ne.s32.totalorder %s299, %s301
      %p305 = scmp.eq.s32.totalorder %s30, 0
      %p306 = por %p304, %p305
      %p307 = scmp.ne.s32.totalorder %s299, %s301
      %p308 = scmp.eq.s32.totalorder %s35, 1
      %p309 = por %p307, %p308
      %p310 = scmp.ne.s32.totalorder %s301, %s302
      %p311 = scmp.eq.s32.totalorder %s35, 0
      %p312 = por %p310, %p311
      %p313 = scmp.ne.s32.totalorder %s301, %s302
      %p314 = scmp.eq.s32.totalorder %s36, 1
      %p315 = por %p313, %p314
      %p317 = scmp.ne.s32.totalorder %s302, %s316
      %p318 = scmp.eq.s32.totalorder %s36, 0
      %p319 = por %p317, %p318
      %s321 = sadd.s32 %s320, 1
      %p324 = scmp.eq.s32.totalorder %s30, 1
      %p325 = scmp.ne.s32.totalorder %s320, %s322
      %p326 = scmp.eq.s32.totalorder %s30, 0
      %p327 = por %p325, %p326
      %p328 = scmp.ne.s32.totalorder %s320, %s322
      %p329 = scmp.eq.s32.totalorder %s35, 1
      %p330 = por %p328, %p329
      %p331 = scmp.ne.s32.totalorder %s322, %s323
      %p332 = scmp.eq.s32.totalorder %s35, 0
      %p333 = por %p331, %p332
      %p334 = scmp.ne.s32.totalorder %s322, %s323
      %p335 = scmp.eq.s32.totalorder %s36, 1
      %p336 = por %p334, %p335
      %p338 = scmp.ne.s32.totalorder %s323, %s337
      %p339 = scmp.eq.s32.totalorder %s36, 0
      %p340 = por %p338, %p339
      %s342 = sadd.s32 %s341, 1
      %p345 = scmp.eq.s32.totalorder %s30, 1
      %p346 = scmp.ne.s32.totalorder %s341, %s343
      %p347 = scmp.eq.s32.totalorder %s30, 0
      %p348 = por %p346, %p347
      %p349 = scmp.ne.s32.totalorder %s341, %s343
      %p350 = scmp.eq.s32.totalorder %s35, 1
      %p351 = por %p349, %p350
      %p352 = scmp.ne.s32.totalorder %s343, %s344
      %p353 = scmp.eq.s32.totalorder %s35, 0
      %p354 = por %p352, %p353
      %p355 = scmp.ne.s32.totalorder %s343, %s344
      %p356 = scmp.eq.s32.totalorder %s36, 1
      %p357 = por %p355, %p356
      %p359 = scmp.ne.s32.totalorder %s344, %s358
      %p360 = scmp.eq.s32.totalorder %s36, 0
      %p361 = por %p359, %p360
      %s362 = ssub.s32 %s30, %s37
      %p363 = scmp.eq.s32.totalorder %s362, 0
      %s365 = sadd.s32 %s364, 1
      %s366 = scalar_select %p363, %s364, %s365
      %p369 = pneg %p363
      %p370 = scmp.eq.s32.totalorder %s30, 1
      %p371 = por %p369, %p370
      %p372 = scmp.ne.s32.totalorder %s364, %s367
      %p373 = scmp.eq.s32.totalorder %s30, 0
      %p374 = por %p372, %p373
      %p375 = scmp.ne.s32.totalorder %s364, %s367
      %p376 = scmp.eq.s32.totalorder %s35, 1
      %p377 = por %p375, %p376
      %p378 = scmp.ne.s32.totalorder %s367, %s368
      %p379 = scmp.eq.s32.totalorder %s35, 0
      %p380 = por %p378, %p379
      %p381 = scmp.ne.s32.totalorder %s367, %s368
      %p382 = scmp.eq.s32.totalorder %s36, 1
      %p383 = por %p381, %p382
      %p385 = scmp.ne.s32.totalorder %s368, %s384
      %p386 = scmp.eq.s32.totalorder %s36, 0
      %p387 = por %p385, %p386
      %p388 = scmp.le.s32.totalorder 1, %s30
      %p389 = scmp.lt.s32.totalorder %s30, 3
      %p390 = pnand %p388, %p389
      %p391 = pneg %p390
      // Predicated region
      $region9: #{tpu_custom_call.1} parent=5 // pred_check
        _
      $region10: #{tpu_custom_call.1} parent=5 // pred_check_branch
        %393 = sbr.rel (%p390) target = $region12
      $region11: #{tpu_custom_call.1} parent=5 // pred_region
        %s394 = ssub.s32 %s30, 1
        // Predicated region
        $region13: #{tpu_custom_call.1} parent=11 // pred_check
          %p395 = pneg %p207
        $region14: #{tpu_custom_call.1} parent=11 // pred_check_branch
          %397 = sbr.rel (%p395) target = $region16
        $region15: #{tpu_custom_call.1} parent=11 // pred_region
          %s399 = ssub.s32 32, 32
          %400 = vsyncadd [#allocation6], %s399
          %s402 = sshll.u32 [#allocation7], 4
          %s403 = int_to_ptr.vmem [resolvable:$true] %s402
          %405 = dma.hbm_to_vmem [thread:$0]  %s6, 32, %s403, [#allocation6]
        $region16: #{tpu_custom_call.1} parent=11 // pred_fallthru
          _
        // Predicated region
        $region17: #{tpu_custom_call.1} parent=11 // pred_check
          %p406 = pneg %p228
        $region18: #{tpu_custom_call.1} parent=11 // pred_check_branch
          %408 = sbr.rel (%p406) target = $region20
        $region19: #{tpu_custom_call.1} parent=11 // pred_region
          _
        $region20: #{tpu_custom_call.1} parent=11 // pred_fallthru
          _
        // Predicated region
        $region21: #{tpu_custom_call.1} parent=11 // pred_check
          %p409 = pneg %p249
        $region22: #{tpu_custom_call.1} parent=11 // pred_check_branch
          %411 = sbr.rel (%p409) target = $region24
        $region23: #{tpu_custom_call.1} parent=11 // pred_region
          %s413 = ssub.s32 3072, 3072
          %414 = vsyncadd [#allocation9], %s413
          %s415 = sshll.u32 [#allocation8], 4
          %s416 = int_to_ptr.vmem [resolvable:$true] %s415
          %421 = dma.hbm_to_vmem [thread:$0]  %s8, 3072, %s416, [#allocation9], 128, 128, 8
        $region24: #{tpu_custom_call.1} parent=11 // pred_fallthru
          _
        // Predicated region
        $region25: #{tpu_custom_call.1} parent=11 // pred_check
          %p422 = pneg %p270
        $region26: #{tpu_custom_call.1} parent=11 // pred_check_branch
          %424 = sbr.rel (%p422) target = $region28
        $region27: #{tpu_custom_call.1} parent=11 // pred_region
          _
        $region28: #{tpu_custom_call.1} parent=11 // pred_fallthru
          _
        // Predicated region
        $region29: #{tpu_custom_call.1} parent=11 // pred_check
          %p425 = pneg %p291
        $region30: #{tpu_custom_call.1} parent=11 // pred_check_branch
          %427 = sbr.rel (%p425) target = $region32
        $region31: #{tpu_custom_call.1} parent=11 // pred_region
          _
        $region32: #{tpu_custom_call.1} parent=11 // pred_fallthru
          _
        // Predicated region
        $region33: #{tpu_custom_call.1} parent=11 // pred_check
          %p428 = pneg %p312
        $region34: #{tpu_custom_call.1} parent=11 // pred_check_branch
          %430 = sbr.rel (%p428) target = $region36
        $region35: #{tpu_custom_call.1} parent=11 // pred_region
          _
        $region36: #{tpu_custom_call.1} parent=11 // pred_fallthru
          _
        // Predicated region
        $region37: #{tpu_custom_call.1} parent=11 // pred_check
          %p431 = pneg %p333
        $region38: #{tpu_custom_call.1} parent=11 // pred_check_branch
          %433 = sbr.rel (%p431) target = $region40
        $region39: #{tpu_custom_call.1} parent=11 // pred_region
          %s435 = ssub.s32 512, 512
          %436 = vsyncadd [#allocation9], %s435
          %s437 = sshll.u32 [#allocation10], 4
          %s438 = int_to_ptr.vmem [resolvable:$true] %s437
          %443 = dma.hbm_to_vmem [thread:$0]  %s12, 512, %s438, [#allocation9], 64, 64, 4
        $region40: #{tpu_custom_call.1} parent=11 // pred_fallthru
          _
        // Predicated region
        $region41: #{tpu_custom_call.1} parent=11 // pred_check
          %p444 = pneg %p354
        $region42: #{tpu_custom_call.1} parent=11 // pred_check_branch
          %446 = sbr.rel (%p444) target = $region44
        $region43: #{tpu_custom_call.1} parent=11 // pred_region
          _
        $region44: #{tpu_custom_call.1} parent=11 // pred_fallthru
          _
      $region12: #{tpu_custom_call.1} parent=5 // pred_fallthru
        _
      %p447 = scmp.lt.s32.totalorder %s30, 2
      // Predicated region
      $region45: #{tpu_custom_call.1} parent=5 // pred_check
        %p448 = pneg %p447
      $region46: #{tpu_custom_call.1} parent=5 // pred_check_branch
        %450 = sbr.rel (%p448) target = $region48
      $region47: #{tpu_custom_call.1} parent=5 // pred_region
        // Predicated region
        $region49: #{tpu_custom_call.1} parent=47 // pred_check
          %p451 = pneg %p50
        $region50: #{tpu_custom_call.1} parent=47 // pred_check_branch
          %453 = sbr.rel (%p451) target = $region52
        $region51: #{tpu_custom_call.1} parent=47 // pred_region
          %p454 = scmp.lt.s32.totalorder %s30, 1
          %s455 = scalar_select %p454, %s30, 1
          %s456 = smul.addr %s455, 4
          %s457 = smul.addr %s456, 8
          %s458 = scalar_lea.vmem %s0, %s457
        $region52: #{tpu_custom_call.1} parent=47 // pred_fallthru
          _
        // Predicated region
        $region53: #{tpu_custom_call.1} parent=47 // pred_check
          %p459 = pneg %p76
        $region54: #{tpu_custom_call.1} parent=47 // pred_check_branch
          %461 = sbr.rel (%p459) target = $region56
        $region55: #{tpu_custom_call.1} parent=47 // pred_region
          %s462 = sand.u32 %s66, 1
          %s463 = scalar_lea.sflag [#allocation3], %s462
          %s464 = sand.u32 %s66, 1
          %s465 = smul.addr %s464, 16
          %s466 = scalar_lea.vmem [#allocation2], %s465
          %s468 = ssub.s32 256, 256
          %469 = vsyncadd %s463, %s468
          %s470 = smul.addr %s30, 4
          %s471 = smul.addr %s470, 64
          %s472 = scalar_lea.hbm %s1, %s471
          %s473 = sshll.u32 %s466, 4
          %s474 = int_to_ptr.vmem [resolvable:$true] %s473
          %479 = dma.hbm_to_vmem [thread:$0]  %s472, 256, %s474, %s463, 64, 64, 4
        $region56: #{tpu_custom_call.1} parent=47 // pred_fallthru
          _
        // Predicated region
        $region57: #{tpu_custom_call.1} parent=47 // pred_check
          %p480 = pneg %p102
        $region58: #{tpu_custom_call.1} parent=47 // pred_check_branch
          %482 = sbr.rel (%p480) target = $region60
        $region59: #{tpu_custom_call.1} parent=47 // pred_region
          %p483 = scmp.lt.s32.totalorder %s30, 1
          %s484 = scalar_select %p483, %s30, 1
          %s485 = smul.addr %s484, 4
          %s486 = smul.addr %s485, 8
          %s487 = scalar_lea.vmem %s2, %s486
        $region60: #{tpu_custom_call.1} parent=47 // pred_fallthru
          _
        // Predicated region
        $region61: #{tpu_custom_call.1} parent=47 // pred_check
          %p488 = pneg %p128
        $region62: #{tpu_custom_call.1} parent=47 // pred_check_branch
          %490 = sbr.rel (%p488) target = $region64
        $region63: #{tpu_custom_call.1} parent=47 // pred_region
          %s491 = sand.u32 %s30, 1
          %s492 = scalar_lea.sflag [#allocation6], %s491
          %s493 = sand.u32 %s118, 1
          %s494 = scalar_lea.vmem [#allocation5], %s493
          %s496 = ssub.s32 16, 16
          %497 = vsyncadd %s492, %s496
          %s498 = smul.addr %s30, 16
          %s499 = scalar_lea.hbm %s3, %s498
          %s501 = sshll.u32 %s494, 4
          %s502 = int_to_ptr.vmem [resolvable:$true] %s501
          %504 = dma.hbm_to_vmem [thread:$0]  %s499, 16, %s502, %s492
        $region64: #{tpu_custom_call.1} parent=47 // pred_fallthru
          _
        // Predicated region
        $region65: #{tpu_custom_call.1} parent=47 // pred_check
          %p505 = pneg %p154
        $region66: #{tpu_custom_call.1} parent=47 // pred_check_branch
          %507 = sbr.rel (%p505) target = $region68
        $region67: #{tpu_custom_call.1} parent=47 // pred_region
          %p508 = scmp.lt.s32.totalorder %s30, 1
          %s509 = scalar_select %p508, %s30, 1
          %s510 = smul.addr %s509, 4
          %s511 = smul.addr %s510, 8
          %s512 = scalar_lea.vmem %s4, %s511
        $region68: #{tpu_custom_call.1} parent=47 // pred_fallthru
          _
        // Predicated region
        $region69: #{tpu_custom_call.1} parent=47 // pred_check
          %p513 = pneg %p180
        $region70: #{tpu_custom_call.1} parent=47 // pred_check_branch
          %515 = sbr.rel (%p513) target = $region72
        $region71: #{tpu_custom_call.1} parent=47 // pred_region
          %p516 = scmp.lt.s32.totalorder %s30, 1
          %s517 = scalar_select %p516, %s30, 1
          %s518 = smul.addr %s517, 4
          %s519 = smul.addr %s518, 8
          %s520 = scalar_lea.vmem %s5, %s519
        $region72: #{tpu_custom_call.1} parent=47 // pred_fallthru
          _
      $region48: #{tpu_custom_call.1} parent=5 // pred_fallthru
        _
      %p521 = scmp.le.s32.totalorder 1, %s30
      %p522 = scmp.lt.s32.totalorder %s30, 3
      %p523 = pnand %p521, %p522
      %p524 = pneg %p523
      // Predicated region
      $region73: #{tpu_custom_call.1} parent=5 // pred_check
        _
      $region74: #{tpu_custom_call.1} parent=5 // pred_check_branch
        %526 = sbr.rel (%p523) target = $region76
      $region75: #{tpu_custom_call.1} parent=5 // pred_region
        %s527 = ssub.s32 %s30, 1
        %s528 = sand.u32 %s69, 1
        %s529 = scalar_lea.sflag [#allocation3], %s528
        %s530 = sand.u32 %s69, 1
        %s531 = smul.addr %s530, 16
        %s532 = scalar_lea.vmem [#allocation2], %s531
        // Predicated region
        $region77: #{tpu_custom_call.1} parent=75 // pred_check
          %p533 = pneg %p82
        $region78: #{tpu_custom_call.1} parent=75 // pred_check_branch
          %535 = sbr.rel (%p533) target = $region80
        $region79: #{tpu_custom_call.1} parent=75 // pred_region
          %536 = dma.done %s529, 256
        $region80: #{tpu_custom_call.1} parent=75 // pred_fallthru
          _
        %s537 = sand.u32 %s35, 1
        %s538 = scalar_lea.sflag [#allocation6], %s537
        %s539 = sand.u32 %s121, 1
        %s540 = scalar_lea.vmem [#allocation5], %s539
        // Predicated region
        $region81: #{tpu_custom_call.1} parent=75 // pred_check
          %p541 = pneg %p134
        $region82: #{tpu_custom_call.1} parent=75 // pred_check_branch
          %543 = sbr.rel (%p541) target = $region84
        $region83: #{tpu_custom_call.1} parent=75 // pred_region
          %544 = dma.done %s538, 16
        $region84: #{tpu_custom_call.1} parent=75 // pred_fallthru
          _
        // Predicated region
        $region85: #{tpu_custom_call.1} parent=75 // pred_check
          %p545 = pneg %p207
        $region86: #{tpu_custom_call.1} parent=75 // pred_check_branch
          %547 = sbr.rel (%p545) target = $region88
        $region87: #{tpu_custom_call.1} parent=75 // pred_region
          %548 = dma.done [#allocation6], 32
        $region88: #{tpu_custom_call.1} parent=75 // pred_fallthru
          _
        // Predicated region
        $region89: #{tpu_custom_call.1} parent=75 // pred_check
          %p549 = pneg %p249
        $region90: #{tpu_custom_call.1} parent=75 // pred_check_branch
          %551 = sbr.rel (%p549) target = $region92
        $region91: #{tpu_custom_call.1} parent=75 // pred_region
          %552 = dma.done [#allocation9], 3072
        $region92: #{tpu_custom_call.1} parent=75 // pred_fallthru
          _
        // Predicated region
        $region93: #{tpu_custom_call.1} parent=75 // pred_check
          %p553 = pneg %p333
        $region94: #{tpu_custom_call.1} parent=75 // pred_check_branch
          %555 = sbr.rel (%p553) target = $region96
        $region95: #{tpu_custom_call.1} parent=75 // pred_region
          %556 = dma.done [#allocation9], 512
        $region96: #{tpu_custom_call.1} parent=75 // pred_fallthru
          _
        %p557 = scmp.lt.s32.totalorder %s35, 1
        %s558 = scalar_select %p557, %s35, 1
        %s559 = smul.addr %s558, 4
        %s560 = smul.addr %s559, 8
        %s561 = scalar_lea.vmem %s0, %s560
        %p562 = pneg %p56
        %p563 = pneg %p53
        %s564 = sand.u32 %s69, 1
        %s565 = scalar_lea.sflag [#allocation3], %s564
        %s566 = sand.u32 %s69, 1
        %s567 = smul.addr %s566, 16
        %s568 = scalar_lea.vmem [#allocation2], %s567
        %p569 = pneg %p82
        %p570 = pneg %p79
        %p571 = scmp.lt.s32.totalorder %s35, 1
        %s572 = scalar_select %p571, %s35, 1
        %s573 = smul.addr %s572, 4
        %s574 = smul.addr %s573, 8
        %s575 = scalar_lea.vmem %s2, %s574
        %p576 = pneg %p108
        %p577 = pneg %p105
        %s578 = sand.u32 %s35, 1
        %s579 = scalar_lea.sflag [#allocation6], %s578
        %s580 = sand.u32 %s121, 1
        %s581 = scalar_lea.vmem [#allocation5], %s580
        %p582 = pneg %p134
        %p583 = pneg %p131
        %p584 = scmp.lt.s32.totalorder %s35, 1
        %s585 = scalar_select %p584, %s35, 1
        %s586 = smul.addr %s585, 4
        %s587 = smul.addr %s586, 8
        %s588 = scalar_lea.vmem %s4, %s587
        %p589 = pneg %p160
        %p590 = pneg %p157
        %p591 = scmp.lt.s32.totalorder %s35, 1
        %s592 = scalar_select %p591, %s35, 1
        %s593 = smul.addr %s592, 4
        %s594 = smul.addr %s593, 8
        %s595 = scalar_lea.vmem %s5, %s594
        %p596 = pneg %p186
        %p597 = pneg %p183
        %p598 = pneg %p207
        %p599 = pneg %p204
        %p600 = pneg %p228
        %p601 = pneg %p225
        %p602 = pneg %p249
        %p603 = pneg %p246
        %p604 = pneg %p270
        %p605 = pneg %p267
        %p606 = pneg %p291
        %p607 = pneg %p288
        %p608 = pneg %p312
        %p609 = pneg %p309
        %p610 = pneg %p333
        %p611 = pneg %p330
        %p612 = pneg %p354
        %p613 = pneg %p351
        %p614 = pneg %p380
        %p615 = pneg %p377
        %s616 = sand.u32 %s367, 1
        %s617 = scalar_lea.sflag [#allocation4], %s616
        %s618 = sand.u32 %s367, 1
        %s619 = smul.addr %s618, 2
        %s620 = scalar_lea.vmem [#allocation11], %s619
        %p621 = scmp.lt.s32.totalorder %s35, 1
        %s622 = scalar_select %p621, %s35, 1
        %s623 = smul.addr %s622, 4
        %s624 = smul.addr %s623, 8
        %s625 = scalar_lea.vmem %s0, %s624
        %p626 = scmp.lt.s32.totalorder %s35, 1
        %s627 = scalar_select %p626, %s35, 1
        %s628 = smul.addr %s627, 4
        %s629 = smul.addr %s628, 8
        %s630 = scalar_lea.vmem %s2, %s629
        %p631 = scmp.lt.s32.totalorder %s35, 1
        %s632 = scalar_select %p631, %s35, 1
        %s633 = smul.addr %s632, 4
        %s634 = smul.addr %s633, 8
        %s635 = scalar_lea.vmem %s4, %s634
        %p636 = scmp.lt.s32.totalorder %s35, 1
        %s637 = scalar_select %p636, %s35, 1
        %s638 = smul.addr %s637, 4
        %s639 = smul.addr %s638, 8
        %s640 = scalar_lea.vmem %s5, %s639
        %v642 = vld [vmem:[%s532] sm:$0xf]
        %v643 = vld [vmem:[%s532 + $0x4] sm:$0xf]
        %v644 = vld [vmem:[%s532 + $0x8] sm:$0xf]
        %v645 = vld [vmem:[%s532 + $0xc] sm:$0xf]
        %v646 = vld [vmem:[%s630] sm:$0xff]
        %v647 = vld [vmem:[%s630 + $0x8] sm:$0xff]
        %v648 = vld [vmem:[%s630 + $0x10] sm:$0xff]
        %v649 = vld [vmem:[%s630 + $0x18] sm:$0xff]
        %v650 = vld [vmem:[%s625] sm:$0xff]
        %v651 = vld [vmem:[%s625 + $0x8] sm:$0xff]
        %v652 = vld [vmem:[%s625 + $0x10] sm:$0xff]
        %v653 = vld [vmem:[%s625 + $0x18] sm:$0xff]
        %v654 = vpack.c.bf16 %v651, %v650
        %v655 = vpack.c.bf16 %v653, %v652
        %v656 = vld [vmem:[#allocation7] sm:$0x3]
        %v657 = vld [vmem:[%s7] sm:$0x1]
        %v659 = vlaneseq
        %v660 = vshrl.u32 %v659, 7
        %v661 = vsub.s32 0, %v660
        %v662 = vrot.slane %v657, %v661
        %vm664 = vcmask 31744
        %v666 = vsel %vm664, %v654, 0
        %v669 = vsel %vm664, %v655, 0
        %vm671 = vcmask 1041408
        %v673 = vsel %vm671, %v656, 0
        %675 = vmatprep.subr.bf16.mxu0 0
        %676 = vmatpush1.bf16.msra.mxu0 %v673
        %677 = vmatprep.subr.bf16.mxu0 0
        %678 = vmatpush1.bf16.msra.mxu0 0
        %679 = vmatprep.subr.bf16.mxu0 0
        %680 = vmatpush1.bf16.msra.mxu0 0
        %681 = vmatprep.subr.bf16.mxu0 0
        %682 = vmatpush1.bf16.msra.mxu0 0
        %683 = vmatprep.subr.bf16.mxu0 0
        %684 = vmatpush1.bf16.msra.mxu0 0
        %685 = vmatprep.subr.bf16.mxu0 0
        %686 = vmatpush1.bf16.msra.mxu0 0
        %687 = vmatprep.subr.bf16.mxu0 0
        %688 = vmatpush1.bf16.msra.mxu0 0
        %689 = vmatprep.subr.bf16.mxu0 0
        %690 = vmatpush1.bf16.msra.mxu0 0
        %691 = vmatprep.subr.bf16.mxu0 0
        %692 = vmatpush1.bf16.msra.mxu0 0
        %693 = vmatprep.subr.bf16.mxu0 0
        %694 = vmatpush1.bf16.msra.mxu0 0
        %695 = vmatprep.subr.bf16.mxu0 0
        %696 = vmatpush1.bf16.msra.mxu0 0
        %697 = vmatprep.subr.bf16.mxu0 0
        %698 = vmatpush1.bf16.msra.mxu0 0
        %699 = vmatprep.subr.bf16.mxu0 0
        %700 = vmatpush1.bf16.msra.mxu0 0
        %701 = vmatprep.subr.bf16.mxu0 0
        %702 = vmatpush1.bf16.msra.mxu0 0
        %703 = vmatprep.subr.bf16.mxu0 0
        %704 = vmatpush1.bf16.msra.mxu0 0
        %705 = vmatprep.subr.bf16.mxu0 0
        %706 = vmatpush1.bf16.msra.mxu0 0
        %707 = vmatprep.mubr.bf16.mxu0 0
        %708 = vmatmul.mubr.bf16.gmra.mrb[0].mxu0 %v666
        %v709 = vpop.f32.mrb[0].mxu0
        %v710 = vadd.f32 %v662, %v709
        %v711 = vpop.f32.mrb[0].mxu0
        %v712 = vpop.f32.mrb[0].mxu0
        %v713 = vadd.f32 %v662, %v712
        %v714 = vpop.f32.mrb[0].mxu0
        %715 = vmatprep.mubr.bf16.mxu0 0
        %716 = vmatmul.mubr.bf16.gmra.mrb[0].mxu0 %v669
        %v717 = vpop.f32.mrb[0].mxu0
        %v718 = vadd.f32 %v662, %v717
        %v719 = vpop.f32.mrb[0].mxu0
        %v720 = vpop.f32.mrb[0].mxu0
        %v721 = vadd.f32 %v662, %v720
        %v722 = vpop.f32.mrb[0].mxu0
        %723 = vdwg.mxu0
        %v724 = vld [vmem:[%s635] sm:$0xff]
        %v725 = vld [vmem:[%s635 + $0x8] sm:$0xff]
        %v726 = vld [vmem:[%s635 + $0x10] sm:$0xff]
        %v727 = vld [vmem:[%s635 + $0x18] sm:$0xff]
        %v728 = vmul.f32 %v710, %v724
        %v729 = vmul.f32 %v713, %v725
        %v730 = vmul.f32 %v718, %v726
        %v731 = vmul.f32 %v721, %v727
        %v732 = vpack.c.bf16 %v729, %v728
        %v733 = vpack.c.bf16 %v731, %v730
        %v734 = vld [vmem:[#allocation8] sm:$0xff]
        %v735 = vld [vmem:[#allocation8 + $0x8] sm:$0xff]
        %v736 = vld [vmem:[#allocation8 + $0x10] sm:$0xff]
        %v737 = vld [vmem:[#allocation8 + $0x18] sm:$0xff]
        %v738 = vld [vmem:[#allocation8 + $0x20] sm:$0xff]
        %v739 = vld [vmem:[#allocation8 + $0x28] sm:$0xff]
        %v740 = vld [vmem:[#allocation8 + $0x30] sm:$0xff]
        %v741 = vld [vmem:[#allocation8 + $0x38] sm:$0xff]
        %v742 = vld [vmem:[%s9] sm:$0x3]
        %v744 = vlaneseq
        %v745 = vshrl.u32 %v744, 7
        %v746 = vsub.s32 0, %v745
        %v747 = vrot.slane %v742, %v746
        %v748 = vlaneseq
        %v749 = vshrl.u32 %v748, 7
        %v750 = vsub.s32 1, %v749
        %v751 = vrot.slane %v742, %v750
        %v762 = vunpack.c.l.b16 %v734
        %v763 = vunpack.c.h.b16 %v734
        %v764 = vunpack.c.l.b16 %v735
        %v765 = vunpack.c.h.b16 %v735
        %v766 = vunpack.c.l.b16 %v736
        %v767 = vunpack.c.h.b16 %v736
        %v768 = vunpack.c.l.b16 %v737
        %v769 = vunpack.c.h.b16 %v737
        %v770 = vunpack.c.l.b16 %v738
        %v771 = vunpack.c.h.b16 %v738
        %v772 = vunpack.c.l.b16 %v739
        %v773 = vunpack.c.h.b16 %v739
        %v774 = vunpack.c.l.b16 %v740
        %v775 = vunpack.c.h.b16 %v740
        %v776 = vunpack.c.l.b16 %v741
        %v777 = vunpack.c.h.b16 %v741
        %v778 = vpack.c.b16 %v764, %v762
        %v779 = vpack.c.b16 %v765, %v763
        %v780 = vpack.c.b16 %v768, %v766
        %v781 = vpack.c.b16 %v769, %v767
        %v782 = vpack.c.b16 %v772, %v770
        %v783 = vpack.c.b16 %v773, %v771
        %v784 = vpack.c.b16 %v776, %v774
        %v785 = vpack.c.b16 %v777, %v775
        %vm794 = vcmask 523264
        %v796 = vsel %vm794, %v732, 0
        %v799 = vsel %vm794, %v733, 0
        %801 = vmatprep.subr.bf16.mxu0 %v779
        %802 = vmatpush1.bf16.msra.mxu0 %v778
        %803 = vmatprep.subr.bf16.mxu0 %v781
        %804 = vmatpush1.bf16.msra.mxu0 %v780
        %805 = vmatprep.subr.bf16.mxu0 %v783
        %806 = vmatpush1.bf16.msra.mxu0 %v782
        %807 = vmatprep.subr.bf16.mxu0 %v785
        %808 = vmatpush1.bf16.msra.mxu0 %v784
        %809 = vmatprep.subr.bf16.mxu0 0
        %810 = vmatpush1.bf16.msra.mxu0 0
        %811 = vmatprep.subr.bf16.mxu0 0
        %812 = vmatpush1.bf16.msra.mxu0 0
        %813 = vmatprep.subr.bf16.mxu0 0
        %814 = vmatpush1.bf16.msra.mxu0 0
        %815 = vmatprep.subr.bf16.mxu0 0
        %816 = vmatpush1.bf16.msra.mxu0 0
        %817 = vmatprep.subr.bf16.mxu0 0
        %818 = vmatpush1.bf16.msra.mxu0 0
        %819 = vmatprep.subr.bf16.mxu0 0
        %820 = vmatpush1.bf16.msra.mxu0 0
        %821 = vmatprep.subr.bf16.mxu0 0
        %822 = vmatpush1.bf16.msra.mxu0 0
        %823 = vmatprep.subr.bf16.mxu0 0
        %824 = vmatpush1.bf16.msra.mxu0 0
        %825 = vmatprep.subr.bf16.mxu0 0
        %826 = vmatpush1.bf16.msra.mxu0 0
        %827 = vmatprep.subr.bf16.mxu0 0
        %828 = vmatpush1.bf16.msra.mxu0 0
        %829 = vmatprep.subr.bf16.mxu0 0
        %830 = vmatpush1.bf16.msra.mxu0 0
        %831 = vmatprep.subr.bf16.mxu0 0
        %832 = vmatpush1.bf16.msra.mxu0 0
        %833 = vmatprep.mubr.bf16.mxu0 0
        %834 = vmatmul.mubr.bf16.gmra.mrb[0].mxu0 %v796
        %v835 = vpop.f32.mrb[0].mxu0
        %v836 = vadd.f32 %v747, %v835
        %v837 = vpop.f32.mrb[0].mxu0
        %v838 = vadd.f32 %v751, %v837
        %v839 = vpop.f32.mrb[0].mxu0
        %v840 = vadd.f32 %v747, %v839
        %v841 = vpop.f32.mrb[0].mxu0
        %v842 = vadd.f32 %v751, %v841
        %843 = vmatprep.mubr.bf16.mxu0 0
        %844 = vmatmul.mubr.bf16.gmra.mrb[0].mxu0 %v799
        %v845 = vpop.f32.mrb[0].mxu0
        %v846 = vadd.f32 %v747, %v845
        %v847 = vpop.f32.mrb[0].mxu0
        %v848 = vadd.f32 %v751, %v847
        %v849 = vpop.f32.mrb[0].mxu0
        %v850 = vadd.f32 %v747, %v849
        %v851 = vpop.f32.mrb[0].mxu0
        %v852 = vadd.f32 %v751, %v851
        %853 = vdwg.mxu0
        %v854 = vpack.c.bf16 %v840, %v836
        %v855 = vpack.c.bf16 %v850, %v846
        %v860 = vunpack.c.l.b16 %v642
        %v861 = vunpack.c.l.b16 %v643
        %v862 = vunpack.c.l.b16 %v644
        %v863 = vunpack.c.l.b16 %v645
        %v864 = vpack.c.b16 %v861, %v860
        %v865 = vpack.c.b16 %v863, %v862
        %vm866 = vcmask 261120
        %v868 = vsel %vm866, %v864, 0
        %v871 = vsel %vm866, %v865, 0
        %873 = vmatprep.subr.bf16.mxu0 0
        %874 = vmatpush1.bf16.msra.mxu0 %v854
        %875 = vmatprep.subr.bf16.mxu0 0
        %876 = vmatpush1.bf16.msra.mxu0 %v855
        %877 = vmatprep.subr.bf16.mxu0 0
        %878 = vmatpush1.bf16.msra.mxu0 0
        %879 = vmatprep.subr.bf16.mxu0 0
        %880 = vmatpush1.bf16.msra.mxu0 0
        %881 = vmatprep.subr.bf16.mxu0 0
        %882 = vmatpush1.bf16.msra.mxu0 0
        %883 = vmatprep.subr.bf16.mxu0 0
        %884 = vmatpush1.bf16.msra.mxu0 0
        %885 = vmatprep.subr.bf16.mxu0 0
        %886 = vmatpush1.bf16.msra.mxu0 0
        %887 = vmatprep.subr.bf16.mxu0 0
        %888 = vmatpush1.bf16.msra.mxu0 0
        %889 = vmatprep.subr.bf16.mxu0 0
        %890 = vmatpush1.bf16.msra.mxu0 0
        %891 = vmatprep.subr.bf16.mxu0 0
        %892 = vmatpush1.bf16.msra.mxu0 0
        %893 = vmatprep.subr.bf16.mxu0 0
        %894 = vmatpush1.bf16.msra.mxu0 0
        %895 = vmatprep.subr.bf16.mxu0 0
        %896 = vmatpush1.bf16.msra.mxu0 0
        %897 = vmatprep.subr.bf16.mxu0 0
        %898 = vmatpush1.bf16.msra.mxu0 0
        %899 = vmatprep.subr.bf16.mxu0 0
        %900 = vmatpush1.bf16.msra.mxu0 0
        %901 = vmatprep.subr.bf16.mxu0 0
        %902 = vmatpush1.bf16.msra.mxu0 0
        %903 = vmatprep.subr.bf16.mxu0 0
        %904 = vmatpush1.bf16.msra.mxu0 0
        %905 = vmatprep.mubr.bf16.mxu0 0
        %906 = vmatmul.mubr.bf16.gmra.mrb[0].mxu0 %v868
        %v907 = vpop.f32.mrb[0].mxu0
        %v908 = vadd.f32 0.0, %v907
        %v909 = vpop.f32.mrb[0].mxu0
        %v910 = vpop.f32.mrb[0].mxu0
        %v911 = vadd.f32 0.0, %v910
        %v912 = vpop.f32.mrb[0].mxu0
        %913 = vmatprep.mubr.bf16.mxu0 0
        %914 = vmatmul.mubr.bf16.gmra.mrb[0].mxu0 %v871
        %v915 = vpop.f32.mrb[0].mxu0
        %v916 = vadd.f32 0.0, %v915
        %v917 = vpop.f32.mrb[0].mxu0
        %v918 = vpop.f32.mrb[0].mxu0
        %v919 = vadd.f32 0.0, %v918
        %v920 = vpop.f32.mrb[0].mxu0
        %921 = vdwg.mxu0
        %923 = vset.pattern.permute.xlu0 0
        %924 = vperm.xlu0 %923, %v646
        %v925 = vpop.permute.xlu0 %924
        %928 = vset.pattern.permute.xlu0 0
        %929 = vperm.xlu0 %928, %v647
        %v930 = vpop.permute.xlu0 %929
        %933 = vset.pattern.permute.xlu0 0
        %934 = vperm.xlu0 %933, %v648
        %v935 = vpop.permute.xlu0 %934
        %938 = vset.pattern.permute.xlu0 0
        %939 = vperm.xlu0 %938, %v649
        %v940 = vpop.permute.xlu0 %939
        %v942 = vmul.f32 %v925, %v836
        %v943 = vmul.f32 %v930, %v840
        %v944 = vmul.f32 %v935, %v846
        %v945 = vmul.f32 %v940, %v850
        %950 = vrot.lane.b32.xlu0 %v942, 64
        %v951 = vpop.permute.xlu0 %950
        %952 = vrot.lane.b32.xlu0 %v943, 64
        %v953 = vpop.permute.xlu0 %952
        %954 = vrot.lane.b32.xlu0 %v944, 64
        %v955 = vpop.permute.xlu0 %954
        %956 = vrot.lane.b32.xlu0 %v945, 64
        %v957 = vpop.permute.xlu0 %956
        %v962 = vsub.f32 %v908, %v951
        %v963 = vsub.f32 %v911, %v953
        %v964 = vsub.f32 %v916, %v955
        %v965 = vsub.f32 %v919, %v957
        %v966 = vadd.f32 %v962, %v838
        %v967 = vadd.f32 %v963, %v842
        %v968 = vadd.f32 %v964, %v848
        %v969 = vadd.f32 %v965, %v852
        %v970 = vmax.f32 %v966, 0.0
        %v971 = vmax.f32 %v967, 0.0
        %v972 = vmax.f32 %v968, 0.0
        %v973 = vmax.f32 %v969, 0.0
        %v974 = vpack.c.bf16 %v971, %v970
        %v975 = vpack.c.bf16 %v973, %v972
        %s976 = scalar_lea.vmem [#allocation8], 64
        %v977 = vld [vmem:[%s976] sm:$0xff]
        %v978 = vld [vmem:[%s976 + $0x8] sm:$0xff]
        %v979 = vld [vmem:[%s976 + $0x10] sm:$0xff]
        %v980 = vld [vmem:[%s976 + $0x18] sm:$0xff]
        %v981 = vld [vmem:[%s976 + $0x20] sm:$0xff]
        %v982 = vld [vmem:[%s976 + $0x28] sm:$0xff]
        %v983 = vld [vmem:[%s976 + $0x30] sm:$0xff]
        %v984 = vld [vmem:[%s976 + $0x38] sm:$0xff]
        %s985 = scalar_lea.vmem %s9, 2
        %v986 = vld [vmem:[%s985] sm:$0x3]
        %v988 = vlaneseq
        %v989 = vshrl.u32 %v988, 7
        %v990 = vsub.s32 0, %v989
        %v991 = vrot.slane %v986, %v990
        %v992 = vlaneseq
        %v993 = vshrl.u32 %v992, 7
        %v994 = vsub.s32 1, %v993
        %v995 = vrot.slane %v986, %v994
        %v1006 = vunpack.c.l.b16 %v977
        %v1007 = vunpack.c.h.b16 %v977
        %v1008 = vunpack.c.l.b16 %v978
        %v1009 = vunpack.c.h.b16 %v978
        %v1010 = vunpack.c.l.b16 %v979
        %v1011 = vunpack.c.h.b16 %v979
        %v1012 = vunpack.c.l.b16 %v980
        %v1013 = vunpack.c.h.b16 %v980
        %v1014 = vunpack.c.l.b16 %v981
        %v1015 = vunpack.c.h.b16 %v981
        %v1016 = vunpack.c.l.b16 %v982
        %v1017 = vunpack.c.h.b16 %v982
        %v1018 = vunpack.c.l.b16 %v983
        %v1019 = vunpack.c.h.b16 %v983
        %v1020 = vunpack.c.l.b16 %v984
        %v1021 = vunpack.c.h.b16 %v984
        %v1022 = vpack.c.b16 %v1008, %v1006
        %v1023 = vpack.c.b16 %v1009, %v1007
        %v1024 = vpack.c.b16 %v1012, %v1010
        %v1025 = vpack.c.b16 %v1013, %v1011
        %v1026 = vpack.c.b16 %v1016, %v1014
        %v1027 = vpack.c.b16 %v1017, %v1015
        %v1028 = vpack.c.b16 %v1020, %v1018
        %v1029 = vpack.c.b16 %v1021, %v1019
        %v1039 = vsel %vm794, %v974, 0
        %v1042 = vsel %vm794, %v975, 0
        %1044 = vmatprep.subr.bf16.mxu0 %v1023
        %1045 = vmatpush1.bf16.msra.mxu0 %v1022
        %1046 = vmatprep.subr.bf16.mxu0 %v1025
        %1047 = vmatpush1.bf16.msra.mxu0 %v1024
        %1048 = vmatprep.subr.bf16.mxu0 %v1027
        %1049 = vmatpush1.bf16.msra.mxu0 %v1026
        %1050 = vmatprep.subr.bf16.mxu0 %v1029
        %1051 = vmatpush1.bf16.msra.mxu0 %v1028
        %1052 = vmatprep.subr.bf16.mxu0 0
        %1053 = vmatpush1.bf16.msra.mxu0 0
        %1054 = vmatprep.subr.bf16.mxu0 0
        %1055 = vmatpush1.bf16.msra.mxu0 0
        %1056 = vmatprep.subr.bf16.mxu0 0
        %1057 = vmatpush1.bf16.msra.mxu0 0
        %1058 = vmatprep.subr.bf16.mxu0 0
        %1059 = vmatpush1.bf16.msra.mxu0 0
        %1060 = vmatprep.subr.bf16.mxu0 0
        %1061 = vmatpush1.bf16.msra.mxu0 0
        %1062 = vmatprep.subr.bf16.mxu0 0
        %1063 = vmatpush1.bf16.msra.mxu0 0
        %1064 = vmatprep.subr.bf16.mxu0 0
        %1065 = vmatpush1.bf16.msra.mxu0 0
        %1066 = vmatprep.subr.bf16.mxu0 0
        %1067 = vmatpush1.bf16.msra.mxu0 0
        %1068 = vmatprep.subr.bf16.mxu0 0
        %1069 = vmatpush1.bf16.msra.mxu0 0
        %1070 = vmatprep.subr.bf16.mxu0 0
        %1071 = vmatpush1.bf16.msra.mxu0 0
        %1072 = vmatprep.subr.bf16.mxu0 0
        %1073 = vmatpush1.bf16.msra.mxu0 0
        %1074 = vmatprep.subr.bf16.mxu0 0
        %1075 = vmatpush1.bf16.msra.mxu0 0
        %1076 = vmatprep.mubr.bf16.mxu0 0
        %1077 = vmatmul.mubr.bf16.gmra.mrb[0].mxu0 %v1039
        %v1078 = vpop.f32.mrb[0].mxu0
        %v1079 = vadd.f32 %v991, %v1078
        %v1080 = vpop.f32.mrb[0].mxu0
        %v1081 = vadd.f32 %v995, %v1080
        %v1082 = vpop.f32.mrb[0].mxu0
        %v1083 = vadd.f32 %v991, %v1082
        %v1084 = vpop.f32.mrb[0].mxu0
        %v1085 = vadd.f32 %v995, %v1084
        %1086 = vmatprep.mubr.bf16.mxu0 0
        %1087 = vmatmul.mubr.bf16.gmra.mrb[0].mxu0 %v1042
        %v1088 = vpop.f32.mrb[0].mxu0
        %v1089 = vadd.f32 %v991, %v1088
        %v1090 = vpop.f32.mrb[0].mxu0
        %v1091 = vadd.f32 %v995, %v1090
        %v1092 = vpop.f32.mrb[0].mxu0
        %v1093 = vadd.f32 %v991, %v1092
        %v1094 = vpop.f32.mrb[0].mxu0
        %v1095 = vadd.f32 %v995, %v1094
        %1096 = vdwg.mxu0
        %v1097 = vpack.c.bf16 %v1083, %v1079
        %v1098 = vpack.c.bf16 %v1093, %v1089
        %1099 = vmatprep.subr.bf16.mxu0 0
        %1100 = vmatpush1.bf16.msra.mxu0 %v1097
        %1101 = vmatprep.subr.bf16.mxu0 0
        %1102 = vmatpush1.bf16.msra.mxu0 %v1098
        %1103 = vmatprep.subr.bf16.mxu0 0
        %1104 = vmatpush1.bf16.msra.mxu0 0
        %1105 = vmatprep.subr.bf16.mxu0 0
        %1106 = vmatpush1.bf16.msra.mxu0 0
        %1107 = vmatprep.subr.bf16.mxu0 0
        %1108 = vmatpush1.bf16.msra.mxu0 0
        %1109 = vmatprep.subr.bf16.mxu0 0
        %1110 = vmatpush1.bf16.msra.mxu0 0
        %1111 = vmatprep.subr.bf16.mxu0 0
        %1112 = vmatpush1.bf16.msra.mxu0 0
        %1113 = vmatprep.subr.bf16.mxu0 0
        %1114 = vmatpush1.bf16.msra.mxu0 0
        %1115 = vmatprep.subr.bf16.mxu0 0
        %1116 = vmatpush1.bf16.msra.mxu0 0
        %1117 = vmatprep.subr.bf16.mxu0 0
        %1118 = vmatpush1.bf16.msra.mxu0 0
        %1119 = vmatprep.subr.bf16.mxu0 0
        %1120 = vmatpush1.bf16.msra.mxu0 0
        %1121 = vmatprep.subr.bf16.mxu0 0
        %1122 = vmatpush1.bf16.msra.mxu0 0
        %1123 = vmatprep.subr.bf16.mxu0 0
        %1124 = vmatpush1.bf16.msra.mxu0 0
        %1125 = vmatprep.subr.bf16.mxu0 0
        %1126 = vmatpush1.bf16.msra.mxu0 0
        %1127 = vmatprep.subr.bf16.mxu0 0
        %1128 = vmatpush1.bf16.msra.mxu0 0
        %1129 = vmatprep.subr.bf16.mxu0 0
        %1130 = vmatpush1.bf16.msra.mxu0 0
        %1131 = vmatprep.mubr.bf16.mxu0 0
        %1132 = vmatmul.mubr.bf16.gmra.mrb[0].mxu0 %v868
        %v1133 = vpop.f32.mrb[0].mxu0
        %v1134 = vadd.f32 0.0, %v1133
        %v1135 = vpop.f32.mrb[0].mxu0
        %v1136 = vpop.f32.mrb[0].mxu0
        %v1137 = vadd.f32 0.0, %v1136
        %v1138 = vpop.f32.mrb[0].mxu0
        %1139 = vmatprep.mubr.bf16.mxu0 0
        %1140 = vmatmul.mubr.bf16.gmra.mrb[0].mxu0 %v871
        %v1141 = vpop.f32.mrb[0].mxu0
        %v1142 = vadd.f32 0.0, %v1141
        %v1143 = vpop.f32.mrb[0].mxu0
        %v1144 = vpop.f32.mrb[0].mxu0
        %v1145 = vadd.f32 0.0, %v1144
        %v1146 = vpop.f32.mrb[0].mxu0
        %1147 = vdwg.mxu0
        %v1148 = vmul.f32 %v925, %v1079
        %v1149 = vmul.f32 %v930, %v1083
        %v1150 = vmul.f32 %v935, %v1089
        %v1151 = vmul.f32 %v940, %v1093
        %1156 = vrot.lane.b32.xlu0 %v1148, 64
        %v1157 = vpop.permute.xlu0 %1156
        %1158 = vrot.lane.b32.xlu0 %v1149, 64
        %v1159 = vpop.permute.xlu0 %1158
        %1160 = vrot.lane.b32.xlu0 %v1150, 64
        %v1161 = vpop.permute.xlu0 %1160
        %1162 = vrot.lane.b32.xlu0 %v1151, 64
        %v1163 = vpop.permute.xlu0 %1162
        %v1168 = vsub.f32 %v1134, %v1157
        %v1169 = vsub.f32 %v1137, %v1159
        %v1170 = vsub.f32 %v1142, %v1161
        %v1171 = vsub.f32 %v1145, %v1163
        %v1172 = vadd.f32 %v1168, %v1081
        %v1173 = vadd.f32 %v1169, %v1085
        %v1174 = vadd.f32 %v1170, %v1091
        %v1175 = vadd.f32 %v1171, %v1095
        %v1176 = vmax.f32 %v1172, 0.0
        %v1177 = vmax.f32 %v1173, 0.0
        %v1178 = vmax.f32 %v1174, 0.0
        %v1179 = vmax.f32 %v1175, 0.0
        %v1180 = vpack.c.bf16 %v1177, %v1176
        %v1181 = vpack.c.bf16 %v1179, %v1178
        %s1182 = scalar_lea.vmem [#allocation8], 128
        %v1183 = vld [vmem:[%s1182] sm:$0xff]
        %v1184 = vld [vmem:[%s1182 + $0x8] sm:$0xff]
        %v1185 = vld [vmem:[%s1182 + $0x10] sm:$0xff]
        %v1186 = vld [vmem:[%s1182 + $0x18] sm:$0xff]
        %v1187 = vld [vmem:[%s1182 + $0x20] sm:$0xff]
        %v1188 = vld [vmem:[%s1182 + $0x28] sm:$0xff]
        %v1189 = vld [vmem:[%s1182 + $0x30] sm:$0xff]
        %v1190 = vld [vmem:[%s1182 + $0x38] sm:$0xff]
        %s1191 = scalar_lea.vmem %s9, 4
        %v1192 = vld [vmem:[%s1191] sm:$0x3]
        %v1194 = vlaneseq
        %v1195 = vshrl.u32 %v1194, 7
        %v1196 = vsub.s32 0, %v1195
        %v1197 = vrot.slane %v1192, %v1196
        %v1198 = vlaneseq
        %v1199 = vshrl.u32 %v1198, 7
        %v1200 = vsub.s32 1, %v1199
        %v1201 = vrot.slane %v1192, %v1200
        %v1212 = vunpack.c.l.b16 %v1183
        %v1213 = vunpack.c.h.b16 %v1183
        %v1214 = vunpack.c.l.b16 %v1184
        %v1215 = vunpack.c.h.b16 %v1184
        %v1216 = vunpack.c.l.b16 %v1185
        %v1217 = vunpack.c.h.b16 %v1185
        %v1218 = vunpack.c.l.b16 %v1186
        %v1219 = vunpack.c.h.b16 %v1186
        %v1220 = vunpack.c.l.b16 %v1187
        %v1221 = vunpack.c.h.b16 %v1187
        %v1222 = vunpack.c.l.b16 %v1188
        %v1223 = vunpack.c.h.b16 %v1188
        %v1224 = vunpack.c.l.b16 %v1189
        %v1225 = vunpack.c.h.b16 %v1189
        %v1226 = vunpack.c.l.b16 %v1190
        %v1227 = vunpack.c.h.b16 %v1190
        %v1228 = vpack.c.b16 %v1214, %v1212
        %v1229 = vpack.c.b16 %v1215, %v1213
        %v1230 = vpack.c.b16 %v1218, %v1216
        %v1231 = vpack.c.b16 %v1219, %v1217
        %v1232 = vpack.c.b16 %v1222, %v1220
        %v1233 = vpack.c.b16 %v1223, %v1221
        %v1234 = vpack.c.b16 %v1226, %v1224
        %v1235 = vpack.c.b16 %v1227, %v1225
        %v1245 = vsel %vm794, %v1180, 0
        %v1248 = vsel %vm794, %v1181, 0
        %1250 = vmatprep.subr.bf16.mxu0 %v1229
        %1251 = vmatpush1.bf16.msra.mxu0 %v1228
        %1252 = vmatprep.subr.bf16.mxu0 %v1231
        %1253 = vmatpush1.bf16.msra.mxu0 %v1230
        %1254 = vmatprep.subr.bf16.mxu0 %v1233
        %1255 = vmatpush1.bf16.msra.mxu0 %v1232
        %1256 = vmatprep.subr.bf16.mxu0 %v1235
        %1257 = vmatpush1.bf16.msra.mxu0 %v1234
        %1258 = vmatprep.subr.bf16.mxu0 0
        %1259 = vmatpush1.bf16.msra.mxu0 0
        %1260 = vmatprep.subr.bf16.mxu0 0
        %1261 = vmatpush1.bf16.msra.mxu0 0
        %1262 = vmatprep.subr.bf16.mxu0 0
        %1263 = vmatpush1.bf16.msra.mxu0 0
        %1264 = vmatprep.subr.bf16.mxu0 0
        %1265 = vmatpush1.bf16.msra.mxu0 0
        %1266 = vmatprep.subr.bf16.mxu0 0
        %1267 = vmatpush1.bf16.msra.mxu0 0
        %1268 = vmatprep.subr.bf16.mxu0 0
        %1269 = vmatpush1.bf16.msra.mxu0 0
        %1270 = vmatprep.subr.bf16.mxu0 0
        %1271 = vmatpush1.bf16.msra.mxu0 0
        %1272 = vmatprep.subr.bf16.mxu0 0
        %1273 = vmatpush1.bf16.msra.mxu0 0
        %1274 = vmatprep.subr.bf16.mxu0 0
        %1275 = vmatpush1.bf16.msra.mxu0 0
        %1276 = vmatprep.subr.bf16.mxu0 0
        %1277 = vmatpush1.bf16.msra.mxu0 0
        %1278 = vmatprep.subr.bf16.mxu0 0
        %1279 = vmatpush1.bf16.msra.mxu0 0
        %1280 = vmatprep.subr.bf16.mxu0 0
        %1281 = vmatpush1.bf16.msra.mxu0 0
        %1282 = vmatprep.mubr.bf16.mxu0 0
        %1283 = vmatmul.mubr.bf16.gmra.mrb[0].mxu0 %v1245
        %v1284 = vpop.f32.mrb[0].mxu0
        %v1285 = vadd.f32 %v1197, %v1284
        %v1286 = vpop.f32.mrb[0].mxu0
        %v1287 = vadd.f32 %v1201, %v1286
        %v1288 = vpop.f32.mrb[0].mxu0
        %v1289 = vadd.f32 %v1197, %v1288
        %v1290 = vpop.f32.mrb[0].mxu0
        %v1291 = vadd.f32 %v1201, %v1290
        %1292 = vmatprep.mubr.bf16.mxu0 0
        %1293 = vmatmul.mubr.bf16.gmra.mrb[0].mxu0 %v1248
        %v1294 = vpop.f32.mrb[0].mxu0
        %v1295 = vadd.f32 %v1197, %v1294
        %v1296 = vpop.f32.mrb[0].mxu0
        %v1297 = vadd.f32 %v1201, %v1296
        %v1298 = vpop.f32.mrb[0].mxu0
        %v1299 = vadd.f32 %v1197, %v1298
        %v1300 = vpop.f32.mrb[0].mxu0
        %v1301 = vadd.f32 %v1201, %v1300
        %1302 = vdwg.mxu0
        %v1303 = vpack.c.bf16 %v1289, %v1285
        %v1304 = vpack.c.bf16 %v1299, %v1295
        %1305 = vmatprep.subr.bf16.mxu0 0
        %1306 = vmatpush1.bf16.msra.mxu0 %v1303
        %1307 = vmatprep.subr.bf16.mxu0 0
        %1308 = vmatpush1.bf16.msra.mxu0 %v1304
        %1309 = vmatprep.subr.bf16.mxu0 0
        %1310 = vmatpush1.bf16.msra.mxu0 0
        %1311 = vmatprep.subr.bf16.mxu0 0
        %1312 = vmatpush1.bf16.msra.mxu0 0
        %1313 = vmatprep.subr.bf16.mxu0 0
        %1314 = vmatpush1.bf16.msra.mxu0 0
        %1315 = vmatprep.subr.bf16.mxu0 0
        %1316 = vmatpush1.bf16.msra.mxu0 0
        %1317 = vmatprep.subr.bf16.mxu0 0
        %1318 = vmatpush1.bf16.msra.mxu0 0
        %1319 = vmatprep.subr.bf16.mxu0 0
        %1320 = vmatpush1.bf16.msra.mxu0 0
        %1321 = vmatprep.subr.bf16.mxu0 0
        %1322 = vmatpush1.bf16.msra.mxu0 0
        %1323 = vmatprep.subr.bf16.mxu0 0
        %1324 = vmatpush1.bf16.msra.mxu0 0
        %1325 = vmatprep.subr.bf16.mxu0 0
        %1326 = vmatpush1.bf16.msra.mxu0 0
        %1327 = vmatprep.subr.bf16.mxu0 0
        %1328 = vmatpush1.bf16.msra.mxu0 0
        %1329 = vmatprep.subr.bf16.mxu0 0
        %1330 = vmatpush1.bf16.msra.mxu0 0
        %1331 = vmatprep.subr.bf16.mxu0 0
        %1332 = vmatpush1.bf16.msra.mxu0 0
        %1333 = vmatprep.subr.bf16.mxu0 0
        %1334 = vmatpush1.bf16.msra.mxu0 0
        %1335 = vmatprep.subr.bf16.mxu0 0
        %1336 = vmatpush1.bf16.msra.mxu0 0
        %1337 = vmatprep.mubr.bf16.mxu0 0
        %1338 = vmatmul.mubr.bf16.gmra.mrb[0].mxu0 %v868
        %v1339 = vpop.f32.mrb[0].mxu0
        %v1340 = vadd.f32 0.0, %v1339
        %v1341 = vpop.f32.mrb[0].mxu0
        %v1342 = vpop.f32.mrb[0].mxu0
        %v1343 = vadd.f32 0.0, %v1342
        %v1344 = vpop.f32.mrb[0].mxu0
        %1345 = vmatprep.mubr.bf16.mxu0 0
        %1346 = vmatmul.mubr.bf16.gmra.mrb[0].mxu0 %v871
        %v1347 = vpop.f32.mrb[0].mxu0
        %v1348 = vadd.f32 0.0, %v1347
        %v1349 = vpop.f32.mrb[0].mxu0
        %v1350 = vpop.f32.mrb[0].mxu0
        %v1351 = vadd.f32 0.0, %v1350
        %v1352 = vpop.f32.mrb[0].mxu0
        %1353 = vdwg.mxu0
        %v1354 = vmul.f32 %v925, %v1285
        %v1355 = vmul.f32 %v930, %v1289
        %v1356 = vmul.f32 %v935, %v1295
        %v1357 = vmul.f32 %v940, %v1299
        %1362 = vrot.lane.b32.xlu0 %v1354, 64
        %v1363 = vpop.permute.xlu0 %1362
        %1364 = vrot.lane.b32.xlu0 %v1355, 64
        %v1365 = vpop.permute.xlu0 %1364
        %1366 = vrot.lane.b32.xlu0 %v1356, 64
        %v1367 = vpop.permute.xlu0 %1366
        %1368 = vrot.lane.b32.xlu0 %v1357, 64
        %v1369 = vpop.permute.xlu0 %1368
        %v1374 = vsub.f32 %v1340, %v1363
        %v1375 = vsub.f32 %v1343, %v1365
        %v1376 = vsub.f32 %v1348, %v1367
        %v1377 = vsub.f32 %v1351, %v1369
        %v1378 = vadd.f32 %v1374, %v1287
        %v1379 = vadd.f32 %v1375, %v1291
        %v1380 = vadd.f32 %v1376, %v1297
        %v1381 = vadd.f32 %v1377, %v1301
        %v1382 = vmax.f32 %v1378, 0.0
        %v1383 = vmax.f32 %v1379, 0.0
        %v1384 = vmax.f32 %v1380, 0.0
        %v1385 = vmax.f32 %v1381, 0.0
        %v1386 = vld [vmem:[%s640] sm:$0xff]
        %v1387 = vld [vmem:[%s640 + $0x8] sm:$0xff]
        %v1388 = vld [vmem:[%s640 + $0x10] sm:$0xff]
        %v1389 = vld [vmem:[%s640 + $0x18] sm:$0xff]
        %v1390 = vmul.f32 %v1382, %v1386
        %v1391 = vmul.f32 %v1383, %v1387
        %v1392 = vmul.f32 %v1384, %v1388
        %v1393 = vmul.f32 %v1385, %v1389
        %v1394 = vld [vmem:[%s540] sm:$0x1]
        %v1395 = vpack.c.bf16 %v1391, %v1390
        %v1396 = vpack.c.bf16 %v1393, %v1392
        %v1398 = vsel %vm866, %v1394, 0
        %1400 = vmatprep.subr.bf16.mxu0 0
        %1401 = vmatpush1.bf16.msra.mxu0 %v1395
        %1402 = vmatprep.subr.bf16.mxu0 0
        %1403 = vmatpush1.bf16.msra.mxu0 %v1396
        %1404 = vmatprep.subr.bf16.mxu0 0
        %1405 = vmatpush1.bf16.msra.mxu0 0
        %1406 = vmatprep.subr.bf16.mxu0 0
        %1407 = vmatpush1.bf16.msra.mxu0 0
        %1408 = vmatprep.subr.bf16.mxu0 0
        %1409 = vmatpush1.bf16.msra.mxu0 0
        %1410 = vmatprep.subr.bf16.mxu0 0
        %1411 = vmatpush1.bf16.msra.mxu0 0
        %1412 = vmatprep.subr.bf16.mxu0 0
        %1413 = vmatpush1.bf16.msra.mxu0 0
        %1414 = vmatprep.subr.bf16.mxu0 0
        %1415 = vmatpush1.bf16.msra.mxu0 0
        %1416 = vmatprep.subr.bf16.mxu0 0
        %1417 = vmatpush1.bf16.msra.mxu0 0
        %1418 = vmatprep.subr.bf16.mxu0 0
        %1419 = vmatpush1.bf16.msra.mxu0 0
        %1420 = vmatprep.subr.bf16.mxu0 0
        %1421 = vmatpush1.bf16.msra.mxu0 0
        %1422 = vmatprep.subr.bf16.mxu0 0
        %1423 = vmatpush1.bf16.msra.mxu0 0
        %1424 = vmatprep.subr.bf16.mxu0 0
        %1425 = vmatpush1.bf16.msra.mxu0 0
        %1426 = vmatprep.subr.bf16.mxu0 0
        %1427 = vmatpush1.bf16.msra.mxu0 0
        %1428 = vmatprep.subr.bf16.mxu0 0
        %1429 = vmatpush1.bf16.msra.mxu0 0
        %1430 = vmatprep.subr.bf16.mxu0 0
        %1431 = vmatpush1.bf16.msra.mxu0 0
        %1432 = vmatprep.mubr.bf16.mxu0 0
        %1433 = vmatmul.mubr.bf16.gmra.mrb[0].mxu0 %v1398
        %v1434 = vpop.f32.mrb[0].mxu0
        %v1435 = vadd.f32 0.0, %v1434
        %v1436 = vpop.f32.mrb[0].mxu0
        %v1437 = vpop.f32.mrb[0].mxu0
        %v1438 = vpop.f32.mrb[0].mxu0
        %1439 = vdwg.mxu0
        %v1440 = vpack.c.bf16 %v1435, %v1435
        %v1441 = vld [vmem:[%s10] sm:$0xf]
        %v1442 = vld [vmem:[%s10 + $0x4] sm:$0xf]
        %v1443 = vld [vmem:[%s10 + $0x8] sm:$0xf]
        %v1444 = vld [vmem:[%s10 + $0xc] sm:$0xf]
        %v1445 = vld [vmem:[%s10 + $0x10] sm:$0xf]
        %v1446 = vld [vmem:[%s10 + $0x14] sm:$0xf]
        %v1447 = vld [vmem:[%s10 + $0x18] sm:$0xf]
        %v1448 = vld [vmem:[%s10 + $0x1c] sm:$0xf]
        %v1449 = vld [vmem:[%s11] sm:$0x1]
        %v1451 = vlaneseq
        %v1452 = vshrl.u32 %v1451, 7
        %v1453 = vsub.s32 0, %v1452
        %v1454 = vrot.slane %v1449, %v1453
        %v1464 = vunpack.c.l.b16 %v1441
        %v1465 = vunpack.c.l.b16 %v1442
        %v1466 = vunpack.c.l.b16 %v1443
        %v1467 = vunpack.c.l.b16 %v1444
        %v1468 = vunpack.c.l.b16 %v1445
        %v1469 = vunpack.c.l.b16 %v1446
        %v1470 = vunpack.c.l.b16 %v1447
        %v1471 = vunpack.c.l.b16 %v1448
        %v1472 = vpack.c.b16 %v1465, %v1464
        %v1473 = vpack.c.b16 %v1467, %v1466
        %v1474 = vpack.c.b16 %v1469, %v1468
        %v1475 = vpack.c.b16 %v1471, %v1470
        %v1481 = vsel %vm794, %v1440, 0
        %1483 = vmatprep.subr.bf16.mxu0 0
        %1484 = vmatpush1.bf16.msra.mxu0 %v1472
        %1485 = vmatprep.subr.bf16.mxu0 0
        %1486 = vmatpush1.bf16.msra.mxu0 %v1473
        %1487 = vmatprep.subr.bf16.mxu0 0
        %1488 = vmatpush1.bf16.msra.mxu0 %v1474
        %1489 = vmatprep.subr.bf16.mxu0 0
        %1490 = vmatpush1.bf16.msra.mxu0 %v1475
        %1491 = vmatprep.subr.bf16.mxu0 0
        %1492 = vmatpush1.bf16.msra.mxu0 0
        %1493 = vmatprep.subr.bf16.mxu0 0
        %1494 = vmatpush1.bf16.msra.mxu0 0
        %1495 = vmatprep.subr.bf16.mxu0 0
        %1496 = vmatpush1.bf16.msra.mxu0 0
        %1497 = vmatprep.subr.bf16.mxu0 0
        %1498 = vmatpush1.bf16.msra.mxu0 0
        %1499 = vmatprep.subr.bf16.mxu0 0
        %1500 = vmatpush1.bf16.msra.mxu0 0
        %1501 = vmatprep.subr.bf16.mxu0 0
        %1502 = vmatpush1.bf16.msra.mxu0 0
        %1503 = vmatprep.subr.bf16.mxu0 0
        %1504 = vmatpush1.bf16.msra.mxu0 0
        %1505 = vmatprep.subr.bf16.mxu0 0
        %1506 = vmatpush1.bf16.msra.mxu0 0
        %1507 = vmatprep.subr.bf16.mxu0 0
        %1508 = vmatpush1.bf16.msra.mxu0 0
        %1509 = vmatprep.subr.bf16.mxu0 0
        %1510 = vmatpush1.bf16.msra.mxu0 0
        %1511 = vmatprep.subr.bf16.mxu0 0
        %1512 = vmatpush1.bf16.msra.mxu0 0
        %1513 = vmatprep.subr.bf16.mxu0 0
        %1514 = vmatpush1.bf16.msra.mxu0 0
        %1515 = vmatprep.mubr.bf16.mxu0 0
        %1516 = vmatmul.mubr.bf16.gmra.mrb[0].mxu0 %v1481
        %v1517 = vpop.f32.mrb[0].mxu0
        %v1518 = vadd.f32 %v1454, %v1517
        %v1519 = vpop.f32.mrb[0].mxu0
        %v1520 = vpop.f32.mrb[0].mxu0
        %v1521 = vpop.f32.mrb[0].mxu0
        %1522 = vdwg.mxu0
        %v1523 = vmax.f32 %v1518, 0.0
        %v1524 = vpack.c.bf16 %v1523, %v1523
        %v1525 = vld [vmem:[#allocation10] sm:$0xf]
        %v1526 = vld [vmem:[#allocation10 + $0x4] sm:$0xf]
        %v1527 = vld [vmem:[#allocation10 + $0x8] sm:$0xf]
        %v1528 = vld [vmem:[#allocation10 + $0xc] sm:$0xf]
        %v1529 = vld [vmem:[#allocation10 + $0x10] sm:$0xf]
        %v1530 = vld [vmem:[#allocation10 + $0x14] sm:$0xf]
        %v1531 = vld [vmem:[#allocation10 + $0x18] sm:$0xf]
        %v1532 = vld [vmem:[#allocation10 + $0x1c] sm:$0xf]
        %v1533 = vld [vmem:[%s13] sm:$0x1]
        %v1535 = vlaneseq
        %v1536 = vshrl.u32 %v1535, 7
        %v1537 = vsub.s32 0, %v1536
        %v1538 = vrot.slane %v1533, %v1537
        %v1548 = vunpack.c.l.b16 %v1525
        %v1549 = vunpack.c.l.b16 %v1526
        %v1550 = vunpack.c.l.b16 %v1527
        %v1551 = vunpack.c.l.b16 %v1528
        %v1552 = vunpack.c.l.b16 %v1529
        %v1553 = vunpack.c.l.b16 %v1530
        %v1554 = vunpack.c.l.b16 %v1531
        %v1555 = vunpack.c.l.b16 %v1532
        %v1556 = vpack.c.b16 %v1549, %v1548
        %v1557 = vpack.c.b16 %v1551, %v1550
        %v1558 = vpack.c.b16 %v1553, %v1552
        %v1559 = vpack.c.b16 %v1555, %v1554
        %v1565 = vsel %vm794, %v1524, 0
        %1567 = vmatprep.subr.bf16.mxu0 0
        %1568 = vmatpush1.bf16.msra.mxu0 %v1556
        %1569 = vmatprep.subr.bf16.mxu0 0
        %1570 = vmatpush1.bf16.msra.mxu0 %v1557
        %1571 = vmatprep.subr.bf16.mxu0 0
        %1572 = vmatpush1.bf16.msra.mxu0 %v1558
        %1573 = vmatprep.subr.bf16.mxu0 0
        %1574 = vmatpush1.bf16.msra.mxu0 %v1559
        %1575 = vmatprep.subr.bf16.mxu0 0
        %1576 = vmatpush1.bf16.msra.mxu0 0
        %1577 = vmatprep.subr.bf16.mxu0 0
        %1578 = vmatpush1.bf16.msra.mxu0 0
        %1579 = vmatprep.subr.bf16.mxu0 0
        %1580 = vmatpush1.bf16.msra.mxu0 0
        %1581 = vmatprep.subr.bf16.mxu0 0
        %1582 = vmatpush1.bf16.msra.mxu0 0
        %1583 = vmatprep.subr.bf16.mxu0 0
        %1584 = vmatpush1.bf16.msra.mxu0 0
        %1585 = vmatprep.subr.bf16.mxu0 0
        %1586 = vmatpush1.bf16.msra.mxu0 0
        %1587 = vmatprep.subr.bf16.mxu0 0
        %1588 = vmatpush1.bf16.msra.mxu0 0
        %1589 = vmatprep.subr.bf16.mxu0 0
        %1590 = vmatpush1.bf16.msra.mxu0 0
        %1591 = vmatprep.subr.bf16.mxu0 0
        %1592 = vmatpush1.bf16.msra.mxu0 0
        %1593 = vmatprep.subr.bf16.mxu0 0
        %1594 = vmatpush1.bf16.msra.mxu0 0
        %1595 = vmatprep.subr.bf16.mxu0 0
        %1596 = vmatpush1.bf16.msra.mxu0 0
        %1597 = vmatprep.subr.bf16.mxu0 0
        %1598 = vmatpush1.bf16.msra.mxu0 0
        %1599 = vmatprep.mubr.bf16.mxu0 0
        %1600 = vmatmul.mubr.bf16.gmra.mrb[0].mxu0 %v1565
        %v1601 = vpop.f32.mrb[0].mxu0
        %v1602 = vadd.f32 %v1538, %v1601
        %v1603 = vpop.f32.mrb[0].mxu0
        %v1604 = vpop.f32.mrb[0].mxu0
        %v1605 = vpop.f32.mrb[0].mxu0
        %1606 = vdwg.mxu0
        %1607 = vst [vmem:[%s620] sm:$0x3] %v1602
        %s1608 = sand.u32 %s367, 1
        %s1609 = scalar_lea.sflag [#allocation4], %s1608
        %s1610 = sand.u32 %s367, 1
        %s1611 = smul.addr %s1610, 2
        %s1612 = scalar_lea.vmem [#allocation11], %s1611
        // Predicated region
        $region97: #{tpu_custom_call.1} parent=75 // pred_check
          %p1613 = pneg %p377
        $region98: #{tpu_custom_call.1} parent=75 // pred_check_branch
          %1615 = sbr.rel (%p1613) target = $region100
        $region99: #{tpu_custom_call.1} parent=75 // pred_region
          %s1617 = ssub.s32 32, 32
          %1618 = vsyncadd %s1609, %s1617
          %s1619 = smul.addr %s35, 32
          %s1620 = scalar_lea.hbm %s14, %s1619
          %s1622 = sshll.u32 %s1612, 4
          %s1623 = int_to_ptr.vmem [resolvable:$true] %s1622
          %1625 = dma.vmem_to_hbm [thread:$0]  %s1623, 32, %s1620, %s1609
        $region100: #{tpu_custom_call.1} parent=75 // pred_fallthru
          _
      $region76: #{tpu_custom_call.1} parent=5 // pred_fallthru
        _
      %p1626 = scmp.le.s32.totalorder 2, %s30
      // Predicated region
      $region101: #{tpu_custom_call.1} parent=5 // pred_check
        %p1627 = pneg %p1626
      $region102: #{tpu_custom_call.1} parent=5 // pred_check_branch
        %1629 = sbr.rel (%p1627) target = $region104
      $region103: #{tpu_custom_call.1} parent=5 // pred_region
        %s1630 = ssub.s32 %s30, 2
        // Predicated region
        $region105: #{tpu_custom_call.1} parent=103 // pred_check
          %p1631 = pneg %p383
        $region106: #{tpu_custom_call.1} parent=103 // pred_check_branch
          %1633 = sbr.rel (%p1631) target = $region108
        $region107: #{tpu_custom_call.1} parent=103 // pred_region
          %s1634 = sand.u32 %s368, 1
          %s1635 = scalar_lea.sflag [#allocation4], %s1634
          %s1636 = sand.u32 %s368, 1
          %s1637 = smul.addr %s1636, 2
          %s1638 = scalar_lea.vmem [#allocation11], %s1637
          %1639 = dma.done %s1635, 32
        $region108: #{tpu_custom_call.1} parent=103 // pred_fallthru
          _
      $region104: #{tpu_custom_call.1} parent=5 // pred_fallthru
        _
    $region6: #{tpu_custom_call.1} parent=1 // loop_footer
      %s34 = sadd.s32 1, %s30
    $region7: #{tpu_custom_call.1} parent=1 // loop_footer_branch
      %29 = sbr.rel target = $region3
    $region8: #{tpu_custom_call.1} parent=1 // loop_exit
      _
    %1640 = vsyncpa [#allocation3], 1
    %s1641 = scalar_lea.sflag [#allocation3], 1
    %1642 = vsyncpa %s1641, 1
    %1643 = vsyncpa [#allocation6], 1
    %s1644 = scalar_lea.sflag [#allocation6], 1
    %1645 = vsyncpa %s1644, 1
    %1646 = vsyncpa [#allocation9], 1
    %1647 = vsyncpa [#allocation4], 1
    %s1648 = scalar_lea.sflag [#allocation4], 1
    %1649 = vsyncpa %s1648, 1

</llo_original>
